<compile_context>
chip_gen: v7x
topology: tpu7x:2x2x1
jax: 0.10.0
libtpu: 0.0.40
codegen_flags: <defaults>
</compile_context>

<pallas_src>
import jax
import jax.numpy as jnp
import numpy as np
from jax.experimental import pallas as pl
from jax.experimental.pallas import tpu as pltpu


# ------------------------------ kernel helpers -------------------------------
def _layernorm(x, gamma, beta, eps=1e-5):
    mean = jnp.mean(x, axis=-1, keepdims=True)
    xc = x - mean
    var = jnp.mean(xc * xc, axis=-1, keepdims=True)
    return xc * jax.lax.rsqrt(var + eps) * gamma + beta


def _gelu(x):
    # tanh-approx GeLU (VPU + EUP); see TODO(synk) above.
    return jax.nn.gelu(x, approximate=True)


# ------------------------------- Pallas kernel --------------------------------
def mixer_block_kernel(x_ref,
                       t_g_ref, t_b_ref, t_w0_ref, t_b0_ref, t_w1_ref, t_b1_ref,
                       c_g_ref, c_b_ref, c_w0_ref, c_b0_ref, c_w1_ref, c_b1_ref,
                       out_ref):
    G, N, D = x_ref.shape                                            # G graphs per step

    x = x_ref[...].astype(jnp.float32)                               # [G, N, D]

    # ---- token mixing (transpose-free): x += W1 @ gelu(W0 @ LN(x) + b0) + b1 ----
    # Per graph g, LN(x[g]) is [N, D]; left-multiplying by W0 [Ht, N] mixes the
    # token axis while keeping D on the lane axis for every intermediate.
    # Batched einsums mirror the proven 'bqk,bkd->bqd' pattern (batch g, contract
    # last-of-lhs vs middle-of-rhs) -> no output transpose is ever generated.
    xn = _layernorm(x, t_g_ref[...], t_b_ref[...])                   # f32 [G, N, D]
    w0 = jnp.broadcast_to(t_w0_ref[...], (G,) + t_w0_ref.shape)      # [G, Ht, N]
    h = jnp.einsum("ghn,gnd->ghd", w0, xn.astype(w0.dtype),
                   preferred_element_type=jnp.float32)               # [G, Ht, D]
    h = _gelu(h + t_b0_ref[...][None].astype(jnp.float32))           # column bias [Ht, 1]
    w1 = jnp.broadcast_to(t_w1_ref[...], (G,) + t_w1_ref.shape)      # [G, N, Ht]
    y = jnp.einsum("gnh,ghd->gnd", w1, h.astype(w1.dtype),
                   preferred_element_type=jnp.float32)               # [G, N, D]
    x = x + y + t_b1_ref[...][None].astype(jnp.float32)              # residual; bias [N, 1]

    # ---- channel mixing: x += W1c(gelu(W0c(LN(x)))) ----
    # Flatten the packed graphs to one [G*N, D] slab -> a single matmul with
    # M = G*N (layout-trivial reshape since N % 8 == 0).
    xn = _layernorm(x, c_g_ref[...], c_b_ref[...])                   # f32 [G, N, D]
    xn2 = xn.reshape(G * N, D)
    h = jnp.dot(xn2.astype(c_w0_ref.dtype), c_w0_ref[...],
                preferred_element_type=jnp.float32)                  # [G*N, Hc]
    h = _gelu(h + c_b0_ref[...].astype(jnp.float32))
    y = jnp.dot(h.astype(c_w1_ref.dtype), c_w1_ref[...],
                preferred_element_type=jnp.float32)                  # [G*N, D]
    y = y + c_b1_ref[...].astype(jnp.float32)

    out_ref[...] = (x + y.reshape(G, N, D)).astype(out_ref.dtype)


# --------------------------------- wrapper ------------------------------------
def _choose_graphs_per_step(batch, n, d, io_itemsize, vmem_budget_bytes):
    """Largest G dividing batch such that the working set fits the VMEM budget
    and (when batch >= 2) at least 2 grid steps remain (v7x megacore sharding)."""
    best = 1
    for g in range(1, batch + 1):
        if batch % g:
            continue
        if batch // g < 2 and batch >= 2:
            continue
        slab_io = g * n * d * io_itemsize       # one in/out slab in the I/O dtype
        slab_f32 = g * n * d * 4                # f32 working copies inside the kernel
        # 2x double-buffered in + 2x out slabs, plus ~12 slab-equivalents of f32
        # intermediates (x, LN, token hidden, channel hidden (4x), residuals, ...).
        if 4 * slab_io + 12 * slab_f32 <= vmem_budget_bytes:
            best = g
    return best


def mixer_block_forward(x, params, *, compute_dtype=None, graphs_per_step=None):
    """Pallas implementation of MixerBlock.forward (token mixing + channel mixing).

    compute_dtype: optional (e.g. jnp.bfloat16) dtype for the x/out streams and all
      matmul operands. LN statistics, GeLU, biases and residual adds stay in f32.
    """
    B, N, D = x.shape
    Ht = params["t_w0"].shape[0]
    Hc = params["c_w0"].shape[0]

    io_dtype = jnp.dtype(compute_dtype) if compute_dtype is not None else x.dtype
    x = x.astype(io_dtype)

    # Budget sized against v7x's 64 MiB physical VMEM per TC; also safe on v5e/v6e.
    vmem_budget = 48 * 1024 * 1024
    if graphs_per_step is None:
        graphs_per_step = _choose_graphs_per_step(B, N, D, io_dtype.itemsize, vmem_budget)
    G = graphs_per_step
    assert B % G == 0, f"graphs_per_step={G} must divide batch={B}"

    f32 = jnp.float32
    inputs = (
        x,
        # Token-mixing params: weights in their ORIGINAL [out, in] layout (kernel
        # left-multiplies, so activations are never transposed); biases as columns.
        params["t_ln_g"].reshape(1, D).astype(f32),
        params["t_ln_b"].reshape(1, D).astype(f32),
        params["t_w0"].astype(io_dtype),                 # [Ht, N]
        params["t_b0"].reshape(Ht, 1).astype(f32),       # column bias
        params["t_w1"].astype(io_dtype),                 # [N, Ht]
        params["t_b1"].reshape(N, 1).astype(f32),        # column bias
        # Channel-mixing params: weights pre-transposed to [in, out]; biases as rows.
        params["c_ln_g"].reshape(1, D).astype(f32),
        params["c_ln_b"].reshape(1, D).astype(f32),
        params["c_w0"].T.astype(io_dtype),               # [D, Hc]
        params["c_b0"].reshape(1, Hc).astype(f32),
        params["c_w1"].T.astype(io_dtype),               # [Hc, D]
        params["c_b1"].reshape(1, D).astype(f32),
    )

    # x / out: G whole graphs per grid step ((N, D) == full trailing dims -> tiling-legal).
    slab = pl.BlockSpec((G, N, D), lambda b: (b, 0, 0))
    # Weights / biases / LN params: full array, same block every step -> VMEM-resident;
    # the constant index_map means the pipeline does not re-DMA them per iteration.
    # TODO(synk): pl.Buffered(1) on these would drop the dead second pipeline buffer;
    # left at the default because the weights here are only a few KiB.
    resident = lambda a: pl.BlockSpec(a.shape, lambda b: (0, 0))

    return pl.pallas_call(
        mixer_block_kernel,
        out_shape=jax.ShapeDtypeStruct((B, N, D), io_dtype),
        grid=(B // G,),
        in_specs=[slab] + [resident(a) for a in inputs[1:]],
        out_specs=slab,
        compiler_params=pltpu.CompilerParams(
            dimension_semantics=("parallel",),   # shard grid steps across TCs (v7x)
            vmem_limit_bytes=vmem_budget,
        ),
    )(*inputs)


# ----------------------------- pure-JAX reference ------------------------------
def mixer_block_ref(x, params):
    def ln(v, g, b, eps=1e-5):
        mean = v.mean(-1, keepdims=True)
        var = ((v - mean) ** 2).mean(-1, keepdims=True)
        return (v - mean) / jnp.sqrt(var + eps) * g + b

    def ff(v, w0, b0, w1, b1):
        h = jax.nn.gelu(v @ w0.T + b0, approximate=True)
        return h @ w1.T + b1

    # token mixing
    y = ln(x, params["t_ln_g"], params["t_ln_b"])
    y = jnp.transpose(y, (0, 2, 1))
    y = ff(y, params["t_w0"], params["t_b0"], params["t_w1"], params["t_b1"])
    x = x + jnp.transpose(y, (0, 2, 1))
    # channel mixing
    y = ln(x, params["c_ln_g"], params["c_ln_b"])
    y = ff(y, params["c_w0"], params["c_b0"], params["c_w1"], params["c_b1"])
    return x + y


# -------------------------------- param init -----------------------------------
def init_params(key, per_graph_size, dims,
                token_expansion_factor=0.5, channel_expansion_factor=4):
    ht = int(token_expansion_factor * per_graph_size)
    hc = int(channel_expansion_factor * dims)
    ks = jax.random.split(key, 12)

    def linear(kw, kb, out_f, in_f):
        bound = 1.0 / np.sqrt(in_f)
        w = jax.random.uniform(kw, (out_f, in_f), jnp.float32, -bound, bound)
        b = jax.random.uniform(kb, (out_f,), jnp.float32, -bound, bound)
        return w, b

    t_w0, t_b0 = linear(ks[0], ks[1], ht, per_graph_size)
    t_w1, t_b1 = linear(ks[2], ks[3], per_graph_size, ht)
    c_w0, c_b0 = linear(ks[4], ks[5], hc, dims)
    c_w1, c_b1 = linear(ks[6], ks[7], dims, hc)

    # LayerNorm affine params (torch init is ones/zeros; perturb to exercise them).
    t_ln_g = 1.0 + 0.1 * jax.random.normal(ks[8], (dims,), jnp.float32)
    t_ln_b = 0.1 * jax.random.normal(ks[9], (dims,), jnp.float32)
    c_ln_g = 1.0 + 0.1 * jax.random.normal(ks[10], (dims,), jnp.float32)
    c_ln_b = 0.1 * jax.random.normal(ks[11], (dims,), jnp.float32)

    return {
        "t_ln_g": t_ln_g, "t_ln_b": t_ln_b,
        "t_w0": t_w0, "t_b0": t_b0, "t_w1": t_w1, "t_b1": t_b1,
        "c_ln_g": c_ln_g, "c_ln_b": c_ln_b,
        "c_w0": c_w0, "c_b0": c_b0, "c_w1": c_w1, "c_b1": c_b1,
    }


if __name__ == "__main__":
    key = jax.random.PRNGKey(0)
    k_param, k_x = jax.random.split(key)

    batch = 8
    per_graph_size = 16   # tokens per graph (N)
    dims = 32             # channels (D); Hc = 4*D = 128 fills the lane dim

    params = init_params(k_param, per_graph_size, dims,
                         token_expansion_factor=0.5, channel_expansion_factor=4)
    x = jax.random.normal(k_x, (batch, per_graph_size, dims), jnp.float32)

    ref = mixer_block_ref(x, params)

    # f32 path: tight numerical check against the pure-JAX reference.
    out = jax.block_until_ready(mixer_block_forward(x, params))
    assert out.shape == (batch, per_graph_size, dims)
    np.testing.assert_allclose(np.asarray(out), np.asarray(ref), rtol=1e-3, atol=1e-3)

    # bf16 I/O + matmul operands (production path on v6e/v7x), f32 accumulation &
    # f32 LN/GeLU/residuals -> loose check against the f32 reference.
    out_bf16 = jax.block_until_ready(
        mixer_block_forward(x, params, compute_dtype=jnp.bfloat16))
    np.testing.assert_allclose(np.asarray(out_bf16.astype(jnp.float32)),
                               np.asarray(ref), rtol=5e-2, atol=1e-1)

    print("KERNEL_OK")
</pallas_src>

<mosaic_0001>
module attributes {stable_mosaic.version = 11 : i64} {
  func.func @mixer_block_kernel(%arg0: i32, %arg1: memref<4x16x32xf32, #tpu.memory_space<vmem>>, %arg2: memref<1x32xf32, #tpu.memory_space<vmem>>, %arg3: memref<1x32xf32, #tpu.memory_space<vmem>>, %arg4: memref<8x16xf32, #tpu.memory_space<vmem>>, %arg5: memref<8x1xf32, #tpu.memory_space<vmem>>, %arg6: memref<16x8xf32, #tpu.memory_space<vmem>>, %arg7: memref<16x1xf32, #tpu.memory_space<vmem>>, %arg8: memref<1x32xf32, #tpu.memory_space<vmem>>, %arg9: memref<1x32xf32, #tpu.memory_space<vmem>>, %arg10: memref<32x128xf32, #tpu.memory_space<vmem>>, %arg11: memref<1x128xf32, #tpu.memory_space<vmem>>, %arg12: memref<128x32xf32, #tpu.memory_space<vmem>>, %arg13: memref<1x32xf32, #tpu.memory_space<vmem>>, %arg14: memref<4x16x32xf32, #tpu.memory_space<vmem>>) attributes {dimension_semantics = [#tpu.dimension_semantics<parallel>], iteration_bounds = array<i64: 2>, scalar_prefetch = 0 : i64, scratch_operands = 0 : i64, tpu.core_type = #tpu.core_type<tc>, window_params = [{transform_indices = @transform_0, window_bounds = array<i64: 4, 16, 32>}, {pipeline_mode = #tpu.pipeline_mode<synchronous>, transform_indices = @transform_1, window_bounds = array<i64: 1, 32>}, {pipeline_mode = #tpu.pipeline_mode<synchronous>, transform_indices = @transform_2, window_bounds = array<i64: 1, 32>}, {pipeline_mode = #tpu.pipeline_mode<synchronous>, transform_indices = @transform_3, window_bounds = array<i64: 8, 16>}, {pipeline_mode = #tpu.pipeline_mode<synchronous>, transform_indices = @transform_4, window_bounds = array<i64: 8, 1>}, {pipeline_mode = #tpu.pipeline_mode<synchronous>, transform_indices = @transform_5, window_bounds = array<i64: 16, 8>}, {pipeline_mode = #tpu.pipeline_mode<synchronous>, transform_indices = @transform_6, window_bounds = array<i64: 16, 1>}, {pipeline_mode = #tpu.pipeline_mode<synchronous>, transform_indices = @transform_7, window_bounds = array<i64: 1, 32>}, {pipeline_mode = #tpu.pipeline_mode<synchronous>, transform_indices = @transform_8, window_bounds = array<i64: 1, 32>}, {pipeline_mode = #tpu.pipeline_mode<synchronous>, transform_indices = @transform_9, window_bounds = array<i64: 32, 128>}, {pipeline_mode = #tpu.pipeline_mode<synchronous>, transform_indices = @transform_10, window_bounds = array<i64: 1, 128>}, {pipeline_mode = #tpu.pipeline_mode<synchronous>, transform_indices = @transform_11, window_bounds = array<i64: 128, 32>}, {pipeline_mode = #tpu.pipeline_mode<synchronous>, transform_indices = @transform_12, window_bounds = array<i64: 1, 32>}, {transform_indices = @transform_13, window_bounds = array<i64: 4, 16, 32>}]} {
    %c0 = arith.constant 0 : index
    %c0_0 = arith.constant 0 : index
    %c0_1 = arith.constant 0 : index
    %0 = vector.load %arg1[%c0, %c0_0, %c0_1] : memref<4x16x32xf32, #tpu.memory_space<vmem>>, vector<4x16x32xf32>
    %c0_2 = arith.constant 0 : index
    %c0_3 = arith.constant 0 : index
    %1 = vector.load %arg2[%c0_2, %c0_3] : memref<1x32xf32, #tpu.memory_space<vmem>>, vector<1x32xf32>
    %c0_4 = arith.constant 0 : index
    %c0_5 = arith.constant 0 : index
    %2 = vector.load %arg3[%c0_4, %c0_5] : memref<1x32xf32, #tpu.memory_space<vmem>>, vector<1x32xf32>
    %cst = arith.constant dense<0.000000e+00> : vector<4x16xf32>
    %3 = vector.multi_reduction <add>, %0, %cst [2] : vector<4x16x32xf32> to vector<4x16xf32>
    %4 = vector.shape_cast %3 : vector<4x16xf32> to vector<4x16x1xf32>
    %cst_6 = arith.constant 3.200000e+01 : f32
    %5 = vector.broadcast %cst_6 : f32 to vector<4x16x1xf32>
    %6 = arith.divf %4, %5 : vector<4x16x1xf32>
    %7 = vector.broadcast %6 : vector<4x16x1xf32> to vector<4x16x32xf32>
    %8 = arith.subf %0, %7 : vector<4x16x32xf32>
    %9 = arith.mulf %8, %8 : vector<4x16x32xf32>
    %cst_7 = arith.constant dense<0.000000e+00> : vector<4x16xf32>
    %10 = vector.multi_reduction <add>, %9, %cst_7 [2] : vector<4x16x32xf32> to vector<4x16xf32>
    %11 = vector.shape_cast %10 : vector<4x16xf32> to vector<4x16x1xf32>
    %cst_8 = arith.constant 3.200000e+01 : f32
    %12 = vector.broadcast %cst_8 : f32 to vector<4x16x1xf32>
    %13 = arith.divf %11, %12 : vector<4x16x1xf32>
    %cst_9 = arith.constant 9.99999974E-6 : f32
    %14 = vector.broadcast %cst_9 : f32 to vector<4x16x1xf32>
    %15 = arith.addf %13, %14 : vector<4x16x1xf32>
    %16 = math.rsqrt %15 : vector<4x16x1xf32>
    %17 = vector.broadcast %16 : vector<4x16x1xf32> to vector<4x16x32xf32>
    %18 = arith.mulf %8, %17 : vector<4x16x32xf32>
    %19 = vector.shape_cast %1 : vector<1x32xf32> to vector<1x1x32xf32>
    %20 = vector.broadcast %19 : vector<1x1x32xf32> to vector<4x16x32xf32>
    %21 = arith.mulf %18, %20 : vector<4x16x32xf32>
    %22 = vector.shape_cast %2 : vector<1x32xf32> to vector<1x1x32xf32>
    %23 = vector.broadcast %22 : vector<1x1x32xf32> to vector<4x16x32xf32>
    %24 = arith.addf %21, %23 : vector<4x16x32xf32>
    %c0_10 = arith.constant 0 : index
    %c0_11 = arith.constant 0 : index
    %25 = vector.load %arg4[%c0_10, %c0_11] : memref<8x16xf32, #tpu.memory_space<vmem>>, vector<8x16xf32>
    %26 = vector.shape_cast %25 : vector<8x16xf32> to vector<1x8x16xf32>
    %27 = vector.broadcast %26 : vector<1x8x16xf32> to vector<4x8x16xf32>
    "tpu.trace_start"() <{level = 10 : i32, message = "ghn,gnd->ghd"}> : () -> ()
    %cst_12 = arith.constant dense<0.000000e+00> : vector<4x8x32xf32>
    %28 = tpu.matmul %27, %24, %cst_12 {dimension_numbers = #tpu.dot_dimension_numbers<[2], [1], [1], [2], [0, 0, 0, 1, 1, 2], [0], [0]>} : vector<4x8x16xf32>, vector<4x16x32xf32>, vector<4x8x32xf32> -> vector<4x8x32xf32>
    "tpu.trace_stop"() : () -> ()
    %c0_13 = arith.constant 0 : index
    %c0_14 = arith.constant 0 : index
    %29 = vector.load %arg5[%c0_13, %c0_14] : memref<8x1xf32, #tpu.memory_space<vmem>>, vector<8x1xf32>
    %30 = vector.shape_cast %29 : vector<8x1xf32> to vector<1x8x1xf32>
    %31 = vector.broadcast %30 : vector<1x8x1xf32> to vector<4x8x32xf32>
    %32 = arith.addf %28, %31 : vector<4x8x32xf32>
    %33 = arith.mulf %32, %32 : vector<4x8x32xf32>
    %34 = arith.mulf %32, %33 : vector<4x8x32xf32>
    %cst_15 = arith.constant 4.471500e-02 : f32
    %35 = vector.broadcast %cst_15 : f32 to vector<4x8x32xf32>
    %36 = arith.mulf %35, %34 : vector<4x8x32xf32>
    %37 = arith.addf %32, %36 : vector<4x8x32xf32>
    %cst_16 = arith.constant 0.797884583 : f32
    %38 = vector.broadcast %cst_16 : f32 to vector<4x8x32xf32>
    %39 = arith.mulf %38, %37 : vector<4x8x32xf32>
    %40 = math.tanh %39 : vector<4x8x32xf32>
    %cst_17 = arith.constant 1.000000e+00 : f32
    %41 = vector.broadcast %cst_17 : f32 to vector<4x8x32xf32>
    %42 = arith.addf %41, %40 : vector<4x8x32xf32>
    %cst_18 = arith.constant 5.000000e-01 : f32
    %43 = vector.broadcast %cst_18 : f32 to vector<4x8x32xf32>
    %44 = arith.mulf %43, %42 : vector<4x8x32xf32>
    %45 = arith.mulf %32, %44 : vector<4x8x32xf32>
    %c0_19 = arith.constant 0 : index
    %c0_20 = arith.constant 0 : index
    %46 = vector.load %arg6[%c0_19, %c0_20] : memref<16x8xf32, #tpu.memory_space<vmem>>, vector<16x8xf32>
    %47 = vector.shape_cast %46 : vector<16x8xf32> to vector<1x16x8xf32>
    %48 = vector.broadcast %47 : vector<1x16x8xf32> to vector<4x16x8xf32>
    "tpu.trace_start"() <{level = 10 : i32, message = "gnh,ghd->gnd"}> : () -> ()
    %cst_21 = arith.constant dense<0.000000e+00> : vector<4x16x32xf32>
    %49 = tpu.matmul %48, %45, %cst_21 {dimension_numbers = #tpu.dot_dimension_numbers<[2], [1], [1], [2], [0, 0, 0, 1, 1, 2], [0], [0]>} : vector<4x16x8xf32>, vector<4x8x32xf32>, vector<4x16x32xf32> -> vector<4x16x32xf32>
    "tpu.trace_stop"() : () -> ()
    %50 = arith.addf %0, %49 : vector<4x16x32xf32>
    %c0_22 = arith.constant 0 : index
    %c0_23 = arith.constant 0 : index
    %51 = vector.load %arg7[%c0_22, %c0_23] : memref<16x1xf32, #tpu.memory_space<vmem>>, vector<16x1xf32>
    %52 = vector.shape_cast %51 : vector<16x1xf32> to vector<1x16x1xf32>
    %53 = vector.broadcast %52 : vector<1x16x1xf32> to vector<4x16x32xf32>
    %54 = arith.addf %50, %53 : vector<4x16x32xf32>
    %c0_24 = arith.constant 0 : index
    %c0_25 = arith.constant 0 : index
    %55 = vector.load %arg8[%c0_24, %c0_25] : memref<1x32xf32, #tpu.memory_space<vmem>>, vector<1x32xf32>
    %c0_26 = arith.constant 0 : index
    %c0_27 = arith.constant 0 : index
    %56 = vector.load %arg9[%c0_26, %c0_27] : memref<1x32xf32, #tpu.memory_space<vmem>>, vector<1x32xf32>
    %cst_28 = arith.constant dense<0.000000e+00> : vector<4x16xf32>
    %57 = vector.multi_reduction <add>, %54, %cst_28 [2] : vector<4x16x32xf32> to vector<4x16xf32>
    %58 = vector.shape_cast %57 : vector<4x16xf32> to vector<4x16x1xf32>
    %cst_29 = arith.constant 3.200000e+01 : f32
    %59 = vector.broadcast %cst_29 : f32 to vector<4x16x1xf32>
    %60 = arith.divf %58, %59 : vector<4x16x1xf32>
    %61 = vector.broadcast %60 : vector<4x16x1xf32> to vector<4x16x32xf32>
    %62 = arith.subf %54, %61 : vector<4x16x32xf32>
    %63 = arith.mulf %62, %62 : vector<4x16x32xf32>
    %cst_30 = arith.constant dense<0.000000e+00> : vector<4x16xf32>
    %64 = vector.multi_reduction <add>, %63, %cst_30 [2] : vector<4x16x32xf32> to vector<4x16xf32>
    %65 = vector.shape_cast %64 : vector<4x16xf32> to vector<4x16x1xf32>
    %cst_31 = arith.constant 3.200000e+01 : f32
    %66 = vector.broadcast %cst_31 : f32 to vector<4x16x1xf32>
    %67 = arith.divf %65, %66 : vector<4x16x1xf32>
    %cst_32 = arith.constant 9.99999974E-6 : f32
    %68 = vector.broadcast %cst_32 : f32 to vector<4x16x1xf32>
    %69 = arith.addf %67, %68 : vector<4x16x1xf32>
    %70 = math.rsqrt %69 : vector<4x16x1xf32>
    %71 = vector.broadcast %70 : vector<4x16x1xf32> to vector<4x16x32xf32>
    %72 = arith.mulf %62, %71 : vector<4x16x32xf32>
    %73 = vector.shape_cast %55 : vector<1x32xf32> to vector<1x1x32xf32>
    %74 = vector.broadcast %73 : vector<1x1x32xf32> to vector<4x16x32xf32>
    %75 = arith.mulf %72, %74 : vector<4x16x32xf32>
    %76 = vector.shape_cast %56 : vector<1x32xf32> to vector<1x1x32xf32>
    %77 = vector.broadcast %76 : vector<1x1x32xf32> to vector<4x16x32xf32>
    %78 = arith.addf %75, %77 : vector<4x16x32xf32>
    %79 = vector.shape_cast %78 : vector<4x16x32xf32> to vector<64x32xf32>
    %c0_33 = arith.constant 0 : index
    %c0_34 = arith.constant 0 : index
    %80 = vector.load %arg10[%c0_33, %c0_34] : memref<32x128xf32, #tpu.memory_space<vmem>>, vector<32x128xf32>
    %cst_35 = arith.constant dense<0.000000e+00> : vector<64x128xf32>
    %81 = tpu.matmul %79, %80, %cst_35 {dimension_numbers = #tpu.dot_dimension_numbers<[1], [0], [0], [1], [0, 0, 1, 1], [], []>} : vector<64x32xf32>, vector<32x128xf32>, vector<64x128xf32> -> vector<64x128xf32>
    %c0_36 = arith.constant 0 : index
    %c0_37 = arith.constant 0 : index
    %82 = vector.load %arg11[%c0_36, %c0_37] : memref<1x128xf32, #tpu.memory_space<vmem>>, vector<1x128xf32>
    %83 = vector.broadcast %82 : vector<1x128xf32> to vector<64x128xf32>
    %84 = arith.addf %81, %83 : vector<64x128xf32>
    %85 = arith.mulf %84, %84 : vector<64x128xf32>
    %86 = arith.mulf %84, %85 : vector<64x128xf32>
    %cst_38 = arith.constant 4.471500e-02 : f32
    %87 = vector.broadcast %cst_38 : f32 to vector<64x128xf32>
    %88 = arith.mulf %87, %86 : vector<64x128xf32>
    %89 = arith.addf %84, %88 : vector<64x128xf32>
    %cst_39 = arith.constant 0.797884583 : f32
    %90 = vector.broadcast %cst_39 : f32 to vector<64x128xf32>
    %91 = arith.mulf %90, %89 : vector<64x128xf32>
    %92 = math.tanh %91 : vector<64x128xf32>
    %cst_40 = arith.constant 1.000000e+00 : f32
    %93 = vector.broadcast %cst_40 : f32 to vector<64x128xf32>
    %94 = arith.addf %93, %92 : vector<64x128xf32>
    %cst_41 = arith.constant 5.000000e-01 : f32
    %95 = vector.broadcast %cst_41 : f32 to vector<64x128xf32>
    %96 = arith.mulf %95, %94 : vector<64x128xf32>
    %97 = arith.mulf %84, %96 : vector<64x128xf32>
    %c0_42 = arith.constant 0 : index
    %c0_43 = arith.constant 0 : index
    %98 = vector.load %arg12[%c0_42, %c0_43] : memref<128x32xf32, #tpu.memory_space<vmem>>, vector<128x32xf32>
    %cst_44 = arith.constant dense<0.000000e+00> : vector<64x32xf32>
    %99 = tpu.matmul %97, %98, %cst_44 {dimension_numbers = #tpu.dot_dimension_numbers<[1], [0], [0], [1], [0, 0, 1, 1], [], []>} : vector<64x128xf32>, vector<128x32xf32>, vector<64x32xf32> -> vector<64x32xf32>
    %c0_45 = arith.constant 0 : index
    %c0_46 = arith.constant 0 : index
    %100 = vector.load %arg13[%c0_45, %c0_46] : memref<1x32xf32, #tpu.memory_space<vmem>>, vector<1x32xf32>
    %101 = vector.broadcast %100 : vector<1x32xf32> to vector<64x32xf32>
    %102 = arith.addf %99, %101 : vector<64x32xf32>
    %103 = vector.shape_cast %102 : vector<64x32xf32> to vector<4x16x32xf32>
    %104 = arith.addf %54, %103 : vector<4x16x32xf32>
    %c0_47 = arith.constant 0 : index
    %c0_48 = arith.constant 0 : index
    %c0_49 = arith.constant 0 : index
    %105 = vector.load %arg14[%c0_47, %c0_48, %c0_49] : memref<4x16x32xf32, #tpu.memory_space<vmem>>, vector<4x16x32xf32>
    tpu.vector_store %arg14[%c0_47, %c0_48, %c0_49], %104 {strides = array<i32>} : memref<4x16x32xf32, #tpu.memory_space<vmem>>, vector<4x16x32xf32>,
    return
  }
  func.func @transform_0(%arg0: i32) -> (i32, i32, i32) {
    %c0_i32 = arith.constant 0 : i32
    %c0_i32_0 = arith.constant 0 : i32
    %c0_i32_1 = arith.constant 0 : i32
    return %arg0, %c0_i32, %c0_i32_0 : i32, i32, i32
  }
  func.func @transform_1(%arg0: i32) -> (i32, i32) {
    %c0_i32 = arith.constant 0 : i32
    %c0_i32_0 = arith.constant 0 : i32
    %c0_i32_1 = arith.constant 0 : i32
    return %c0_i32, %c0_i32_0 : i32, i32
  }
  func.func @transform_2(%arg0: i32) -> (i32, i32) {
    %c0_i32 = arith.constant 0 : i32
    %c0_i32_0 = arith.constant 0 : i32
    %c0_i32_1 = arith.constant 0 : i32
    return %c0_i32, %c0_i32_0 : i32, i32
  }
  func.func @transform_3(%arg0: i32) -> (i32, i32) {
    %c0_i32 = arith.constant 0 : i32
    %c0_i32_0 = arith.constant 0 : i32
    %c0_i32_1 = arith.constant 0 : i32
    return %c0_i32, %c0_i32_0 : i32, i32
  }
  func.func @transform_4(%arg0: i32) -> (i32, i32) {
    %c0_i32 = arith.constant 0 : i32
    %c0_i32_0 = arith.constant 0 : i32
    %c0_i32_1 = arith.constant 0 : i32
    return %c0_i32, %c0_i32_0 : i32, i32
  }
  func.func @transform_5(%arg0: i32) -> (i32, i32) {
    %c0_i32 = arith.constant 0 : i32
    %c0_i32_0 = arith.constant 0 : i32
    %c0_i32_1 = arith.constant 0 : i32
    return %c0_i32, %c0_i32_0 : i32, i32
  }
  func.func @transform_6(%arg0: i32) -> (i32, i32) {
    %c0_i32 = arith.constant 0 : i32
    %c0_i32_0 = arith.constant 0 : i32
    %c0_i32_1 = arith.constant 0 : i32
    return %c0_i32, %c0_i32_0 : i32, i32
  }
  func.func @transform_7(%arg0: i32) -> (i32, i32) {
    %c0_i32 = arith.constant 0 : i32
    %c0_i32_0 = arith.constant 0 : i32
    %c0_i32_1 = arith.constant 0 : i32
    return %c0_i32, %c0_i32_0 : i32, i32
  }
  func.func @transform_8(%arg0: i32) -> (i32, i32) {
    %c0_i32 = arith.constant 0 : i32
    %c0_i32_0 = arith.constant 0 : i32
    %c0_i32_1 = arith.constant 0 : i32
    return %c0_i32, %c0_i32_0 : i32, i32
  }
  func.func @transform_9(%arg0: i32) -> (i32, i32) {
    %c0_i32 = arith.constant 0 : i32
    %c0_i32_0 = arith.constant 0 : i32
    %c0_i32_1 = arith.constant 0 : i32
    return %c0_i32, %c0_i32_0 : i32, i32
  }
  func.func @transform_10(%arg0: i32) -> (i32, i32) {
    %c0_i32 = arith.constant 0 : i32
    %c0_i32_0 = arith.constant 0 : i32
    %c0_i32_1 = arith.constant 0 : i32
    return %c0_i32, %c0_i32_0 : i32, i32
  }
  func.func @transform_11(%arg0: i32) -> (i32, i32) {
    %c0_i32 = arith.constant 0 : i32
    %c0_i32_0 = arith.constant 0 : i32
    %c0_i32_1 = arith.constant 0 : i32
    return %c0_i32, %c0_i32_0 : i32, i32
  }
  func.func @transform_12(%arg0: i32) -> (i32, i32) {
    %c0_i32 = arith.constant 0 : i32
    %c0_i32_0 = arith.constant 0 : i32
    %c0_i32_1 = arith.constant 0 : i32
    return %c0_i32, %c0_i32_0 : i32, i32
  }
  func.func @transform_13(%arg0: i32) -> (i32, i32, i32) {
    %c0_i32 = arith.constant 0 : i32
    %c0_i32_0 = arith.constant 0 : i32
    %c0_i32_1 = arith.constant 0 : i32
    return %arg0, %c0_i32, %c0_i32_0 : i32, i32, i32
  }
}

</mosaic_0001>

<llo_original>
// kernel: tpu_custom_call.1
$region0: #{tpu_custom_call.1}
  #allocation0 [shape = 'u32[]', space=smem, size = 0x4, offset = 0x4, fixed_abs, tag = 'smem constant byte address 0x4 - core index']
  #allocation1 [shape = 'u32[144,128]{1,0:T(1,128)}', space=vmem, size = 0x12000, scoped, tag = 'internal scratch']
  %s0 = inlined_call_operand.vmem [shape: f32[8,16,32], index: 0, kind: input, shape index: {}]
  %s1 = inlined_call_operand.vmem [shape: f32[1,32], index: 1, kind: input, shape index: {}]
  %s2 = inlined_call_operand.vmem [shape: f32[1,32], index: 2, kind: input, shape index: {}]
  %s3 = inlined_call_operand.vmem [shape: f32[8,16], index: 3, kind: input, shape index: {}]
  %s4 = inlined_call_operand.vmem [shape: f32[8,1], index: 4, kind: input, shape index: {}]
  %s5 = inlined_call_operand.vmem [shape: f32[16,8], index: 5, kind: input, shape index: {}]
  %s6 = inlined_call_operand.vmem [shape: f32[16,1], index: 6, kind: input, shape index: {}]
  %s7 = inlined_call_operand.vmem [shape: f32[1,32], index: 7, kind: input, shape index: {}]
  %s8 = inlined_call_operand.vmem [shape: f32[1,32], index: 8, kind: input, shape index: {}]
  %s9 = inlined_call_operand.vmem [shape: f32[32,128], index: 9, kind: input, shape index: {}]
  %s10 = inlined_call_operand.vmem [shape: f32[1,128], index: 10, kind: input, shape index: {}]
  %s11 = inlined_call_operand.vmem [shape: f32[128,32], index: 11, kind: input, shape index: {}]
  %s12 = inlined_call_operand.vmem [shape: f32[1,32], index: 12, kind: input, shape index: {}]
  %s13 = inlined_call_operand.hbm [shape: f32[8,16,32], index: 13, kind: output, shape index: {}]
  %s14 = sld [smem:[#allocation0]]
  $region85: #{tpu_custom_call.1} parent=0
    _
  %s16 = ssub.s32 1, %s14
  %s17 = scalar_select 0, %s16, %s14
  $region1: #{tpu_custom_call.1} parent=0
    #allocation2 [shape = 'u8[65536]{0}', space=vmem, size = 0x10000, scoped, tag = 'output window, operand 0']
    #allocation3 [shape = 's32[2]{0}', space=sflag, size = 0x8, scoped, tag = 'scoped memory for tpu_custom_call.1']
    %18 = vsyncpa [#allocation3], 0
    %s19 = scalar_lea.sflag [#allocation3], 1
    %20 = vsyncpa %s19, 0
    loop: start=0, step=1, limit=4
    $region2: #{tpu_custom_call.1} parent=1 // loop_pre_header
      _
    $region3: #{tpu_custom_call.1} parent=1 // loop_header
      %s22 = sphi 0, %s26
      %p23 = scmp.ge.s32.totalorder %s22, 4
      %s32 = sphi 0, %s34
      %s35 = sphi 0, %s32
      %s36 = sphi 0, %s35
      %s52 = sphi 0, %s36
      %s56 = sphi 0, %s56
      %s58 = sphi 0, %s56
      %s59 = sphi 0, %s58
      %s73 = sphi 0, %s59
      %s77 = sphi 0, %s77
      %s79 = sphi 0, %s77
      %s80 = sphi 0, %s79
      %s94 = sphi 0, %s80
      %s98 = sphi 0, %s98
      %s100 = sphi 0, %s98
      %s101 = sphi 0, %s100
      %s115 = sphi 0, %s101
      %s119 = sphi 0, %s119
      %s121 = sphi 0, %s119
      %s122 = sphi 0, %s121
      %s136 = sphi 0, %s122
      %s140 = sphi 0, %s140
      %s142 = sphi 0, %s140
      %s143 = sphi 0, %s142
      %s157 = sphi 0, %s143
      %s161 = sphi 0, %s161
      %s163 = sphi 0, %s161
      %s164 = sphi 0, %s163
      %s178 = sphi 0, %s164
      %s182 = sphi 0, %s182
      %s184 = sphi 0, %s182
      %s185 = sphi 0, %s184
      %s199 = sphi 0, %s185
      %s203 = sphi 0, %s203
      %s205 = sphi 0, %s203
      %s206 = sphi 0, %s205
      %s220 = sphi 0, %s206
      %s224 = sphi 0, %s224
      %s226 = sphi 0, %s224
      %s227 = sphi 0, %s226
      %s241 = sphi 0, %s227
      %s245 = sphi 0, %s245
      %s247 = sphi 0, %s245
      %s248 = sphi 0, %s247
      %s262 = sphi 0, %s248
      %s266 = sphi 0, %s266
      %s268 = sphi 0, %s266
      %s269 = sphi 0, %s268
      %s283 = sphi 0, %s269
      %s287 = sphi 0, %s287
      %s289 = sphi 0, %s287
      %s290 = sphi 0, %s289
      %s304 = sphi 0, %s290
      %s310 = sphi 0, %s312
      %s313 = sphi 0, %s310
      %s314 = sphi 0, %s313
      %s330 = sphi 0, %s314
    $region4: #{tpu_custom_call.1} parent=1 // loop_header_branch
      %25 = sbr.rel (%p23) target = $region8
    $region5: #{tpu_custom_call.1} parent=1 // loop_body
      %s27 = ssub.s32 %s22, 1
      %s28 = ssub.s32 %s22, 2
      %s29 = sadd.s32 %s22, 1
      %s30 = ssub.s32 %s22, %s29
      %p31 = scmp.eq.s32.totalorder %s30, 0
      %s33 = sadd.s32 %s32, 1
      %s34 = scalar_select %p31, %s32, %s33
      %p37 = pneg %p31
      %p38 = scmp.eq.s32.totalorder %s22, 1
      %p39 = por %p37, %p38
      %p40 = scmp.ne.s32.totalorder %s32, %s35
      %p41 = scmp.eq.s32.totalorder %s22, 0
      %p42 = por %p40, %p41
      %p43 = scmp.ne.s32.totalorder %s32, %s35
      %p44 = scmp.eq.s32.totalorder %s27, 1
      %p45 = por %p43, %p44
      %p46 = scmp.ne.s32.totalorder %s35, %s36
      %p47 = scmp.eq.s32.totalorder %s27, 0
      %p48 = por %p46, %p47
      %p49 = scmp.ne.s32.totalorder %s35, %s36
      %p50 = scmp.eq.s32.totalorder %s28, 1
      %p51 = por %p49, %p50
      %p53 = scmp.ne.s32.totalorder %s36, %s52
      %p54 = scmp.eq.s32.totalorder %s28, 0
      %p55 = por %p53, %p54
      %s57 = sadd.s32 %s56, 1
      %p60 = scmp.eq.s32.totalorder %s22, 1
      %p61 = scmp.ne.s32.totalorder %s56, %s58
      %p62 = scmp.eq.s32.totalorder %s22, 0
      %p63 = por %p61, %p62
      %p64 = scmp.ne.s32.totalorder %s56, %s58
      %p65 = scmp.eq.s32.totalorder %s27, 1
      %p66 = por %p64, %p65
      %p67 = scmp.ne.s32.totalorder %s58, %s59
      %p68 = scmp.eq.s32.totalorder %s27, 0
      %p69 = por %p67, %p68
      %p70 = scmp.ne.s32.totalorder %s58, %s59
      %p71 = scmp.eq.s32.totalorder %s28, 1
      %p72 = por %p70, %p71
      %p74 = scmp.ne.s32.totalorder %s59, %s73
      %p75 = scmp.eq.s32.totalorder %s28, 0
      %p76 = por %p74, %p75
      %s78 = sadd.s32 %s77, 1
      %p81 = scmp.eq.s32.totalorder %s22, 1
      %p82 = scmp.ne.s32.totalorder %s77, %s79
      %p83 = scmp.eq.s32.totalorder %s22, 0
      %p84 = por %p82, %p83
      %p85 = scmp.ne.s32.totalorder %s77, %s79
      %p86 = scmp.eq.s32.totalorder %s27, 1
      %p87 = por %p85, %p86
      %p88 = scmp.ne.s32.totalorder %s79, %s80
      %p89 = scmp.eq.s32.totalorder %s27, 0
      %p90 = por %p88, %p89
      %p91 = scmp.ne.s32.totalorder %s79, %s80
      %p92 = scmp.eq.s32.totalorder %s28, 1
      %p93 = por %p91, %p92
      %p95 = scmp.ne.s32.totalorder %s80, %s94
      %p96 = scmp.eq.s32.totalorder %s28, 0
      %p97 = por %p95, %p96
      %s99 = sadd.s32 %s98, 1
      %p102 = scmp.eq.s32.totalorder %s22, 1
      %p103 = scmp.ne.s32.totalorder %s98, %s100
      %p104 = scmp.eq.s32.totalorder %s22, 0
      %p105 = por %p103, %p104
      %p106 = scmp.ne.s32.totalorder %s98, %s100
      %p107 = scmp.eq.s32.totalorder %s27, 1
      %p108 = por %p106, %p107
      %p109 = scmp.ne.s32.totalorder %s100, %s101
      %p110 = scmp.eq.s32.totalorder %s27, 0
      %p111 = por %p109, %p110
      %p112 = scmp.ne.s32.totalorder %s100, %s101
      %p113 = scmp.eq.s32.totalorder %s28, 1
      %p114 = por %p112, %p113
      %p116 = scmp.ne.s32.totalorder %s101, %s115
      %p117 = scmp.eq.s32.totalorder %s28, 0
      %p118 = por %p116, %p117
      %s120 = sadd.s32 %s119, 1
      %p123 = scmp.eq.s32.totalorder %s22, 1
      %p124 = scmp.ne.s32.totalorder %s119, %s121
      %p125 = scmp.eq.s32.totalorder %s22, 0
      %p126 = por %p124, %p125
      %p127 = scmp.ne.s32.totalorder %s119, %s121
      %p128 = scmp.eq.s32.totalorder %s27, 1
      %p129 = por %p127, %p128
      %p130 = scmp.ne.s32.totalorder %s121, %s122
      %p131 = scmp.eq.s32.totalorder %s27, 0
      %p132 = por %p130, %p131
      %p133 = scmp.ne.s32.totalorder %s121, %s122
      %p134 = scmp.eq.s32.totalorder %s28, 1
      %p135 = por %p133, %p134
      %p137 = scmp.ne.s32.totalorder %s122, %s136
      %p138 = scmp.eq.s32.totalorder %s28, 0
      %p139 = por %p137, %p138
      %s141 = sadd.s32 %s140, 1
      %p144 = scmp.eq.s32.totalorder %s22, 1
      %p145 = scmp.ne.s32.totalorder %s140, %s142
      %p146 = scmp.eq.s32.totalorder %s22, 0
      %p147 = por %p145, %p146
      %p148 = scmp.ne.s32.totalorder %s140, %s142
      %p149 = scmp.eq.s32.totalorder %s27, 1
      %p150 = por %p148, %p149
      %p151 = scmp.ne.s32.totalorder %s142, %s143
      %p152 = scmp.eq.s32.totalorder %s27, 0
      %p153 = por %p151, %p152
      %p154 = scmp.ne.s32.totalorder %s142, %s143
      %p155 = scmp.eq.s32.totalorder %s28, 1
      %p156 = por %p154, %p155
      %p158 = scmp.ne.s32.totalorder %s143, %s157
      %p159 = scmp.eq.s32.totalorder %s28, 0
      %p160 = por %p158, %p159
      %s162 = sadd.s32 %s161, 1
      %p165 = scmp.eq.s32.totalorder %s22, 1
      %p166 = scmp.ne.s32.totalorder %s161, %s163
      %p167 = scmp.eq.s32.totalorder %s22, 0
      %p168 = por %p166, %p167
      %p169 = scmp.ne.s32.totalorder %s161, %s163
      %p170 = scmp.eq.s32.totalorder %s27, 1
      %p171 = por %p169, %p170
      %p172 = scmp.ne.s32.totalorder %s163, %s164
      %p173 = scmp.eq.s32.totalorder %s27, 0
      %p174 = por %p172, %p173
      %p175 = scmp.ne.s32.totalorder %s163, %s164
      %p176 = scmp.eq.s32.totalorder %s28, 1
      %p177 = por %p175, %p176
      %p179 = scmp.ne.s32.totalorder %s164, %s178
      %p180 = scmp.eq.s32.totalorder %s28, 0
      %p181 = por %p179, %p180
      %s183 = sadd.s32 %s182, 1
      %p186 = scmp.eq.s32.totalorder %s22, 1
      %p187 = scmp.ne.s32.totalorder %s182, %s184
      %p188 = scmp.eq.s32.totalorder %s22, 0
      %p189 = por %p187, %p188
      %p190 = scmp.ne.s32.totalorder %s182, %s184
      %p191 = scmp.eq.s32.totalorder %s27, 1
      %p192 = por %p190, %p191
      %p193 = scmp.ne.s32.totalorder %s184, %s185
      %p194 = scmp.eq.s32.totalorder %s27, 0
      %p195 = por %p193, %p194
      %p196 = scmp.ne.s32.totalorder %s184, %s185
      %p197 = scmp.eq.s32.totalorder %s28, 1
      %p198 = por %p196, %p197
      %p200 = scmp.ne.s32.totalorder %s185, %s199
      %p201 = scmp.eq.s32.totalorder %s28, 0
      %p202 = por %p200, %p201
      %s204 = sadd.s32 %s203, 1
      %p207 = scmp.eq.s32.totalorder %s22, 1
      %p208 = scmp.ne.s32.totalorder %s203, %s205
      %p209 = scmp.eq.s32.totalorder %s22, 0
      %p210 = por %p208, %p209
      %p211 = scmp.ne.s32.totalorder %s203, %s205
      %p212 = scmp.eq.s32.totalorder %s27, 1
      %p213 = por %p211, %p212
      %p214 = scmp.ne.s32.totalorder %s205, %s206
      %p215 = scmp.eq.s32.totalorder %s27, 0
      %p216 = por %p214, %p215
      %p217 = scmp.ne.s32.totalorder %s205, %s206
      %p218 = scmp.eq.s32.totalorder %s28, 1
      %p219 = por %p217, %p218
      %p221 = scmp.ne.s32.totalorder %s206, %s220
      %p222 = scmp.eq.s32.totalorder %s28, 0
      %p223 = por %p221, %p222
      %s225 = sadd.s32 %s224, 1
      %p228 = scmp.eq.s32.totalorder %s22, 1
      %p229 = scmp.ne.s32.totalorder %s224, %s226
      %p230 = scmp.eq.s32.totalorder %s22, 0
      %p231 = por %p229, %p230
      %p232 = scmp.ne.s32.totalorder %s224, %s226
      %p233 = scmp.eq.s32.totalorder %s27, 1
      %p234 = por %p232, %p233
      %p235 = scmp.ne.s32.totalorder %s226, %s227
      %p236 = scmp.eq.s32.totalorder %s27, 0
      %p237 = por %p235, %p236
      %p238 = scmp.ne.s32.totalorder %s226, %s227
      %p239 = scmp.eq.s32.totalorder %s28, 1
      %p240 = por %p238, %p239
      %p242 = scmp.ne.s32.totalorder %s227, %s241
      %p243 = scmp.eq.s32.totalorder %s28, 0
      %p244 = por %p242, %p243
      %s246 = sadd.s32 %s245, 1
      %p249 = scmp.eq.s32.totalorder %s22, 1
      %p250 = scmp.ne.s32.totalorder %s245, %s247
      %p251 = scmp.eq.s32.totalorder %s22, 0
      %p252 = por %p250, %p251
      %p253 = scmp.ne.s32.totalorder %s245, %s247
      %p254 = scmp.eq.s32.totalorder %s27, 1
      %p255 = por %p253, %p254
      %p256 = scmp.ne.s32.totalorder %s247, %s248
      %p257 = scmp.eq.s32.totalorder %s27, 0
      %p258 = por %p256, %p257
      %p259 = scmp.ne.s32.totalorder %s247, %s248
      %p260 = scmp.eq.s32.totalorder %s28, 1
      %p261 = por %p259, %p260
      %p263 = scmp.ne.s32.totalorder %s248, %s262
      %p264 = scmp.eq.s32.totalorder %s28, 0
      %p265 = por %p263, %p264
      %s267 = sadd.s32 %s266, 1
      %p270 = scmp.eq.s32.totalorder %s22, 1
      %p271 = scmp.ne.s32.totalorder %s266, %s268
      %p272 = scmp.eq.s32.totalorder %s22, 0
      %p273 = por %p271, %p272
      %p274 = scmp.ne.s32.totalorder %s266, %s268
      %p275 = scmp.eq.s32.totalorder %s27, 1
      %p276 = por %p274, %p275
      %p277 = scmp.ne.s32.totalorder %s268, %s269
      %p278 = scmp.eq.s32.totalorder %s27, 0
      %p279 = por %p277, %p278
      %p280 = scmp.ne.s32.totalorder %s268, %s269
      %p281 = scmp.eq.s32.totalorder %s28, 1
      %p282 = por %p280, %p281
      %p284 = scmp.ne.s32.totalorder %s269, %s283
      %p285 = scmp.eq.s32.totalorder %s28, 0
      %p286 = por %p284, %p285
      %s288 = sadd.s32 %s287, 1
      %p291 = scmp.eq.s32.totalorder %s22, 1
      %p292 = scmp.ne.s32.totalorder %s287, %s289
      %p293 = scmp.eq.s32.totalorder %s22, 0
      %p294 = por %p292, %p293
      %p295 = scmp.ne.s32.totalorder %s287, %s289
      %p296 = scmp.eq.s32.totalorder %s27, 1
      %p297 = por %p295, %p296
      %p298 = scmp.ne.s32.totalorder %s289, %s290
      %p299 = scmp.eq.s32.totalorder %s27, 0
      %p300 = por %p298, %p299
      %p301 = scmp.ne.s32.totalorder %s289, %s290
      %p302 = scmp.eq.s32.totalorder %s28, 1
      %p303 = por %p301, %p302
      %p305 = scmp.ne.s32.totalorder %s290, %s304
      %p306 = scmp.eq.s32.totalorder %s28, 0
      %p307 = por %p305, %p306
      %s308 = ssub.s32 %s22, %s29
      %p309 = scmp.eq.s32.totalorder %s308, 0
      %s311 = sadd.s32 %s310, 1
      %s312 = scalar_select %p309, %s310, %s311
      %p315 = pneg %p309
      %p316 = scmp.eq.s32.totalorder %s22, 1
      %p317 = por %p315, %p316
      %p318 = scmp.ne.s32.totalorder %s310, %s313
      %p319 = scmp.eq.s32.totalorder %s22, 0
      %p320 = por %p318, %p319
      %p321 = scmp.ne.s32.totalorder %s310, %s313
      %p322 = scmp.eq.s32.totalorder %s27, 1
      %p323 = por %p321, %p322
      %p324 = scmp.ne.s32.totalorder %s313, %s314
      %p325 = scmp.eq.s32.totalorder %s27, 0
      %p326 = por %p324, %p325
      %p327 = scmp.ne.s32.totalorder %s313, %s314
      %p328 = scmp.eq.s32.totalorder %s28, 1
      %p329 = por %p327, %p328
      %p331 = scmp.ne.s32.totalorder %s314, %s330
      %p332 = scmp.eq.s32.totalorder %s28, 0
      %p333 = por %p331, %p332
      %p334 = scmp.le.s32.totalorder 1, %s22
      %p335 = scmp.lt.s32.totalorder %s22, 3
      %p336 = pnand %p334, %p335
      %p337 = pneg %p336
      // Predicated region
      $region9: #{tpu_custom_call.1} parent=5 // pred_check
        _
      $region10: #{tpu_custom_call.1} parent=5 // pred_check_branch
        %339 = sbr.rel (%p336) target = $region12
      $region11: #{tpu_custom_call.1} parent=5 // pred_region
        %s340 = ssub.s32 %s22, 1
        // Predicated region
        $region13: #{tpu_custom_call.1} parent=11 // pred_check
          %p341 = pneg %p69
        $region14: #{tpu_custom_call.1} parent=11 // pred_check_branch
          %343 = sbr.rel (%p341) target = $region16
        $region15: #{tpu_custom_call.1} parent=11 // pred_region
          _
        $region16: #{tpu_custom_call.1} parent=11 // pred_fallthru
          _
        // Predicated region
        $region17: #{tpu_custom_call.1} parent=11 // pred_check
          %p344 = pneg %p90
        $region18: #{tpu_custom_call.1} parent=11 // pred_check_branch
          %346 = sbr.rel (%p344) target = $region20
        $region19: #{tpu_custom_call.1} parent=11 // pred_region
          _
        $region20: #{tpu_custom_call.1} parent=11 // pred_fallthru
          _
        // Predicated region
        $region21: #{tpu_custom_call.1} parent=11 // pred_check
          %p347 = pneg %p111
        $region22: #{tpu_custom_call.1} parent=11 // pred_check_branch
          %349 = sbr.rel (%p347) target = $region24
        $region23: #{tpu_custom_call.1} parent=11 // pred_region
          _
        $region24: #{tpu_custom_call.1} parent=11 // pred_fallthru
          _
        // Predicated region
        $region25: #{tpu_custom_call.1} parent=11 // pred_check
          %p350 = pneg %p132
        $region26: #{tpu_custom_call.1} parent=11 // pred_check_branch
          %352 = sbr.rel (%p350) target = $region28
        $region27: #{tpu_custom_call.1} parent=11 // pred_region
          _
        $region28: #{tpu_custom_call.1} parent=11 // pred_fallthru
          _
        // Predicated region
        $region29: #{tpu_custom_call.1} parent=11 // pred_check
          %p353 = pneg %p153
        $region30: #{tpu_custom_call.1} parent=11 // pred_check_branch
          %355 = sbr.rel (%p353) target = $region32
        $region31: #{tpu_custom_call.1} parent=11 // pred_region
          _
        $region32: #{tpu_custom_call.1} parent=11 // pred_fallthru
          _
        // Predicated region
        $region33: #{tpu_custom_call.1} parent=11 // pred_check
          %p356 = pneg %p174
        $region34: #{tpu_custom_call.1} parent=11 // pred_check_branch
          %358 = sbr.rel (%p356) target = $region36
        $region35: #{tpu_custom_call.1} parent=11 // pred_region
          _
        $region36: #{tpu_custom_call.1} parent=11 // pred_fallthru
          _
        // Predicated region
        $region37: #{tpu_custom_call.1} parent=11 // pred_check
          %p359 = pneg %p195
        $region38: #{tpu_custom_call.1} parent=11 // pred_check_branch
          %361 = sbr.rel (%p359) target = $region40
        $region39: #{tpu_custom_call.1} parent=11 // pred_region
          _
        $region40: #{tpu_custom_call.1} parent=11 // pred_fallthru
          _
        // Predicated region
        $region41: #{tpu_custom_call.1} parent=11 // pred_check
          %p362 = pneg %p216
        $region42: #{tpu_custom_call.1} parent=11 // pred_check_branch
          %364 = sbr.rel (%p362) target = $region44
        $region43: #{tpu_custom_call.1} parent=11 // pred_region
          _
        $region44: #{tpu_custom_call.1} parent=11 // pred_fallthru
          _
        // Predicated region
        $region45: #{tpu_custom_call.1} parent=11 // pred_check
          %p365 = pneg %p237
        $region46: #{tpu_custom_call.1} parent=11 // pred_check_branch
          %367 = sbr.rel (%p365) target = $region48
        $region47: #{tpu_custom_call.1} parent=11 // pred_region
          _
        $region48: #{tpu_custom_call.1} parent=11 // pred_fallthru
          _
        // Predicated region
        $region49: #{tpu_custom_call.1} parent=11 // pred_check
          %p368 = pneg %p258
        $region50: #{tpu_custom_call.1} parent=11 // pred_check_branch
          %370 = sbr.rel (%p368) target = $region52
        $region51: #{tpu_custom_call.1} parent=11 // pred_region
          _
        $region52: #{tpu_custom_call.1} parent=11 // pred_fallthru
          _
        // Predicated region
        $region53: #{tpu_custom_call.1} parent=11 // pred_check
          %p371 = pneg %p279
        $region54: #{tpu_custom_call.1} parent=11 // pred_check_branch
          %373 = sbr.rel (%p371) target = $region56
        $region55: #{tpu_custom_call.1} parent=11 // pred_region
          _
        $region56: #{tpu_custom_call.1} parent=11 // pred_fallthru
          _
        // Predicated region
        $region57: #{tpu_custom_call.1} parent=11 // pred_check
          %p374 = pneg %p300
        $region58: #{tpu_custom_call.1} parent=11 // pred_check_branch
          %376 = sbr.rel (%p374) target = $region60
        $region59: #{tpu_custom_call.1} parent=11 // pred_region
          _
        $region60: #{tpu_custom_call.1} parent=11 // pred_fallthru
          _
      $region12: #{tpu_custom_call.1} parent=5 // pred_fallthru
        _
      %p377 = scmp.lt.s32.totalorder %s22, 2
      // Predicated region
      $region61: #{tpu_custom_call.1} parent=5 // pred_check
        %p378 = pneg %p377
      $region62: #{tpu_custom_call.1} parent=5 // pred_check_branch
        %380 = sbr.rel (%p378) target = $region64
      $region63: #{tpu_custom_call.1} parent=5 // pred_region
        // Predicated region
        $region65: #{tpu_custom_call.1} parent=63 // pred_check
          %p381 = pneg %p42
        $region66: #{tpu_custom_call.1} parent=63 // pred_check_branch
          %383 = sbr.rel (%p381) target = $region68
        $region67: #{tpu_custom_call.1} parent=63 // pred_region
          %s384 = smul.u32 4, %s22
          %p385 = scmp.lt.s32.totalorder %s384, 7
          %s386 = scalar_select %p385, %s384, 7
          %s387 = smul.addr %s386, 2
          %s388 = smul.addr %s387, 8
          %s389 = scalar_lea.vmem %s0, %s388
          %s390 = smul.u32 4, %s22
        $region68: #{tpu_custom_call.1} parent=63 // pred_fallthru
          _
      $region64: #{tpu_custom_call.1} parent=5 // pred_fallthru
        _
      %p391 = scmp.le.s32.totalorder 1, %s22
      %p392 = scmp.lt.s32.totalorder %s22, 3
      %p393 = pnand %p391, %p392
      %p394 = pneg %p393
      // Predicated region
      $region69: #{tpu_custom_call.1} parent=5 // pred_check
        _
      $region70: #{tpu_custom_call.1} parent=5 // pred_check_branch
        %396 = sbr.rel (%p393) target = $region72
      $region71: #{tpu_custom_call.1} parent=5 // pred_region
        %s397 = ssub.s32 %s22, 1
        %s398 = smul.u32 4, %s27
        %p399 = scmp.lt.s32.totalorder %s398, 7
        %s400 = scalar_select %p399, %s398, 7
        %s401 = smul.addr %s400, 2
        %s402 = smul.addr %s401, 8
        %s403 = scalar_lea.vmem %s0, %s402
        %p404 = pneg %p48
        %p405 = pneg %p45
        %p406 = pneg %p69
        %p407 = pneg %p66
        %p408 = pneg %p90
        %p409 = pneg %p87
        %p410 = pneg %p111
        %p411 = pneg %p108
        %p412 = pneg %p132
        %p413 = pneg %p129
        %p414 = pneg %p153
        %p415 = pneg %p150
        %p416 = pneg %p174
        %p417 = pneg %p171
        %p418 = pneg %p195
        %p419 = pneg %p192
        %p420 = pneg %p216
        %p421 = pneg %p213
        %p422 = pneg %p237
        %p423 = pneg %p234
        %p424 = pneg %p258
        %p425 = pneg %p255
        %p426 = pneg %p279
        %p427 = pneg %p276
        %p428 = pneg %p300
        %p429 = pneg %p297
        %p430 = pneg %p326
        %p431 = pneg %p323
        %s432 = sand.u32 %s313, 1
        %s433 = scalar_lea.sflag [#allocation3], %s432
        %s434 = sand.u32 %s313, 1
        %s435 = smul.addr %s434, 64
        %s436 = scalar_lea.vmem [#allocation2], %s435
        %s437 = smul.u32 4, %s27
        %p438 = scmp.lt.s32.totalorder %s437, 7
        %s439 = scalar_select %p438, %s437, 7
        %s440 = smul.addr %s439, 2
        %s441 = smul.addr %s440, 8
        %s442 = scalar_lea.vmem %s0, %s441
        %s443 = smul.u32 4, %s27
        %s444 = smul.u32 4, %s27
        %v445 = vld [vmem:[%s442] sm:$0xff]
        %v446 = vld [vmem:[%s442 + $0x8] sm:$0xff]
        %v447 = vld [vmem:[%s442 + $0x10] sm:$0xff]
        %v448 = vld [vmem:[%s442 + $0x18] sm:$0xff]
        %v449 = vld [vmem:[%s442 + $0x20] sm:$0xff]
        %v450 = vld [vmem:[%s442 + $0x28] sm:$0xff]
        %v451 = vld [vmem:[%s442 + $0x30] sm:$0xff]
        %v452 = vld [vmem:[%s442 + $0x38] sm:$0xff]
        %v453 = vld [vmem:[%s1] sm:$0x1]
        %v454 = vld [vmem:[%s2] sm:$0x1]
        %vm455 = vcmask 261120
        %v456 = vsel %vm455, %v445, 0.0
        %457 = vadd.xlane.f32.xlu0 %v456
        %v458 = vpop.xlane.xlu0 %457
        %v459 = vsel %vm455, %v446, 0.0
        %460 = vadd.xlane.f32.xlu0 %v459
        %v461 = vpop.xlane.xlu0 %460
        %v462 = vsel %vm455, %v447, 0.0
        %463 = vadd.xlane.f32.xlu0 %v462
        %v464 = vpop.xlane.xlu0 %463
        %v465 = vsel %vm455, %v448, 0.0
        %466 = vadd.xlane.f32.xlu0 %v465
        %v467 = vpop.xlane.xlu0 %466
        %v468 = vsel %vm455, %v449, 0.0
        %469 = vadd.xlane.f32.xlu0 %v468
        %v470 = vpop.xlane.xlu0 %469
        %v471 = vsel %vm455, %v450, 0.0
        %472 = vadd.xlane.f32.xlu0 %v471
        %v473 = vpop.xlane.xlu0 %472
        %v474 = vsel %vm455, %v451, 0.0
        %475 = vadd.xlane.f32.xlu0 %v474
        %v476 = vpop.xlane.xlu0 %475
        %v477 = vsel %vm455, %v452, 0.0
        %478 = vadd.xlane.f32.xlu0 %v477
        %v479 = vpop.xlane.xlu0 %478
        %v480 = vrcp.pop 32.0
        %v481 = vmul.f32 %v458, %v480
        %v482 = vmul.f32 %v461, %v480
        %v483 = vmul.f32 %v464, %v480
        %v484 = vmul.f32 %v467, %v480
        %v485 = vmul.f32 %v470, %v480
        %v486 = vmul.f32 %v473, %v480
        %v487 = vmul.f32 %v476, %v480
        %v488 = vmul.f32 %v479, %v480
        %v489 = vsub.f32 %v445, %v481
        %v490 = vsub.f32 %v446, %v482
        %v491 = vsub.f32 %v447, %v483
        %v492 = vsub.f32 %v448, %v484
        %v493 = vsub.f32 %v449, %v485
        %v494 = vsub.f32 %v450, %v486
        %v495 = vsub.f32 %v451, %v487
        %v496 = vsub.f32 %v452, %v488
        %v497 = vmul.f32 %v489, %v489
        %v498 = vmul.f32 %v490, %v490
        %v499 = vmul.f32 %v491, %v491
        %v500 = vmul.f32 %v492, %v492
        %v501 = vmul.f32 %v493, %v493
        %v502 = vmul.f32 %v494, %v494
        %v503 = vmul.f32 %v495, %v495
        %v504 = vmul.f32 %v496, %v496
        %v505 = vsel %vm455, %v497, 0.0
        %506 = vadd.xlane.f32.xlu0 %v505
        %v507 = vpop.xlane.xlu0 %506
        %v508 = vsel %vm455, %v498, 0.0
        %509 = vadd.xlane.f32.xlu0 %v508
        %v510 = vpop.xlane.xlu0 %509
        %v511 = vsel %vm455, %v499, 0.0
        %512 = vadd.xlane.f32.xlu0 %v511
        %v513 = vpop.xlane.xlu0 %512
        %v514 = vsel %vm455, %v500, 0.0
        %515 = vadd.xlane.f32.xlu0 %v514
        %v516 = vpop.xlane.xlu0 %515
        %v517 = vsel %vm455, %v501, 0.0
        %518 = vadd.xlane.f32.xlu0 %v517
        %v519 = vpop.xlane.xlu0 %518
        %v520 = vsel %vm455, %v502, 0.0
        %521 = vadd.xlane.f32.xlu0 %v520
        %v522 = vpop.xlane.xlu0 %521
        %v523 = vsel %vm455, %v503, 0.0
        %524 = vadd.xlane.f32.xlu0 %v523
        %v525 = vpop.xlane.xlu0 %524
        %v526 = vsel %vm455, %v504, 0.0
        %527 = vadd.xlane.f32.xlu0 %v526
        %v528 = vpop.xlane.xlu0 %527
        %v529 = vmul.f32 %v507, %v480
        %v530 = vmul.f32 %v510, %v480
        %v531 = vmul.f32 %v513, %v480
        %v532 = vmul.f32 %v516, %v480
        %v533 = vmul.f32 %v519, %v480
        %v534 = vmul.f32 %v522, %v480
        %v535 = vmul.f32 %v525, %v480
        %v536 = vmul.f32 %v528, %v480
        %v537 = vadd.f32 %v529, 1e-05
        %v538 = vadd.f32 %v530, 1e-05
        %v539 = vadd.f32 %v531, 1e-05
        %v540 = vadd.f32 %v532, 1e-05
        %v541 = vadd.f32 %v533, 1e-05
        %v542 = vadd.f32 %v534, 1e-05
        %v543 = vadd.f32 %v535, 1e-05
        %v544 = vadd.f32 %v536, 1e-05
        %v545 = vrsqrt.pop %v537
        %v546 = vrsqrt.pop %v538
        %v547 = vrsqrt.pop %v539
        %v548 = vrsqrt.pop %v540
        %v549 = vrsqrt.pop %v541
        %v550 = vrsqrt.pop %v542
        %v551 = vrsqrt.pop %v543
        %v552 = vrsqrt.pop %v544
        %v553 = vmul.f32 %v489, %v545
        %v554 = vmul.f32 %v490, %v546
        %v555 = vmul.f32 %v491, %v547
        %v556 = vmul.f32 %v492, %v548
        %v557 = vmul.f32 %v493, %v549
        %v558 = vmul.f32 %v494, %v550
        %v559 = vmul.f32 %v495, %v551
        %v560 = vmul.f32 %v496, %v552
        %v562 = vlaneseq
        %v563 = vshrl.u32 %v562, 7
        %v564 = vsub.s32 0, %v563
        %v565 = vrot.slane %v453, %v564
        %v567 = vmul.f32 %v553, %v565
        %v568 = vmul.f32 %v554, %v565
        %v569 = vmul.f32 %v555, %v565
        %v570 = vmul.f32 %v556, %v565
        %v571 = vmul.f32 %v557, %v565
        %v572 = vmul.f32 %v558, %v565
        %v573 = vmul.f32 %v559, %v565
        %v574 = vmul.f32 %v560, %v565
        %v576 = vlaneseq
        %v577 = vshrl.u32 %v576, 7
        %v578 = vsub.s32 0, %v577
        %v579 = vrot.slane %v454, %v578
        %v581 = vadd.f32 %v567, %v579
        %v582 = vadd.f32 %v568, %v579
        %v583 = vadd.f32 %v569, %v579
        %v584 = vadd.f32 %v570, %v579
        %v585 = vadd.f32 %v571, %v579
        %v586 = vadd.f32 %v572, %v579
        %v587 = vadd.f32 %v573, %v579
        %v588 = vadd.f32 %v574, %v579
        %v589 = vld [vmem:[%s3] sm:$0xff]
        %v590 = vld [vmem:[%s4] sm:$0xff]
        %592 = vset.pattern.permute.xlu0 0
        %593 = vperm.xlu0 %592, %v590
        %v594 = vpop.permute.xlu0 %593
        %vm596 = vcmask 130048
        %v598 = vsel %vm596, %v589, 0
        %600 = vmatprep.subr.mxu0 0.0
        %601 = vmatpush1.msra.mxu0 %v581
        %602 = vmatprep.subr.mxu0 0.0
        %603 = vmatpush1.msra.mxu0 %v582
        %604 = vmatprep.subr.mxu0 0.0
        %605 = vmatpush1.msra.mxu0 0.0
        %606 = vmatprep.subr.mxu0 0.0
        %607 = vmatpush1.msra.mxu0 0.0
        %608 = vmatprep.subr.mxu0 0.0
        %609 = vmatpush1.msra.mxu0 0.0
        %610 = vmatprep.subr.mxu0 0.0
        %611 = vmatpush1.msra.mxu0 0.0
        %612 = vmatprep.subr.mxu0 0.0
        %613 = vmatpush1.msra.mxu0 0.0
        %614 = vmatprep.subr.mxu0 0.0
        %615 = vmatpush1.msra.mxu0 0.0
        %616 = vmatprep.subr.mxu0 0.0
        %617 = vmatpush1.msra.mxu0 0.0
        %618 = vmatprep.subr.mxu0 0.0
        %619 = vmatpush1.msra.mxu0 0.0
        %620 = vmatprep.subr.mxu0 0.0
        %621 = vmatpush1.msra.mxu0 0.0
        %622 = vmatprep.subr.mxu0 0.0
        %623 = vmatpush1.msra.mxu0 0.0
        %624 = vmatprep.subr.mxu0 0.0
        %625 = vmatpush1.msra.mxu0 0.0
        %626 = vmatprep.subr.mxu0 0.0
        %627 = vmatpush1.msra.mxu0 0.0
        %628 = vmatprep.subr.mxu0 0.0
        %629 = vmatpush1.msra.mxu0 0.0
        %630 = vmatprep.subr.mxu0 0.0
        %631 = vmatpush1.msra.mxu0 0.0
        %632 = vmatprep.subr.mxu0 0.0
        %633 = vmatpush1.msra.mxu0 0.0
        %634 = vmatprep.subr.mxu0 0.0
        %635 = vmatpush1.msra.mxu0 0.0
        %636 = vmatprep.subr.mxu0 0.0
        %637 = vmatpush1.msra.mxu0 0.0
        %638 = vmatprep.subr.mxu0 0.0
        %639 = vmatpush1.msra.mxu0 0.0
        %640 = vmatprep.subr.mxu0 0.0
        %641 = vmatpush1.msra.mxu0 0.0
        %642 = vmatprep.subr.mxu0 0.0
        %643 = vmatpush1.msra.mxu0 0.0
        %644 = vmatprep.subr.mxu0 0.0
        %645 = vmatpush1.msra.mxu0 0.0
        %646 = vmatprep.subr.mxu0 0.0
        %647 = vmatpush1.msra.mxu0 0.0
        %648 = vmatprep.subr.mxu0 0.0
        %649 = vmatpush1.msra.mxu0 0.0
        %650 = vmatprep.subr.mxu0 0.0
        %651 = vmatpush1.msra.mxu0 0.0
        %652 = vmatprep.subr.mxu0 0.0
        %653 = vmatpush1.msra.mxu0 0.0
        %654 = vmatprep.subr.mxu0 0.0
        %655 = vmatpush1.msra.mxu0 0.0
        %656 = vmatprep.subr.mxu0 0.0
        %657 = vmatpush1.msra.mxu0 0.0
        %658 = vmatprep.subr.mxu0 0.0
        %659 = vmatpush1.msra.mxu0 0.0
        %660 = vmatprep.subr.mxu0 0.0
        %661 = vmatpush1.msra.mxu0 0.0
        %662 = vmatprep.subr.mxu0 0.0
        %663 = vmatpush1.msra.mxu0 0.0
        %664 = vmatprep.mubr.f32.mxu0 0.0
        %665 = vmatmul.mubr.f32.gmra.mrb[0].mxu0 %v598
        %v666 = vpop.f32.mrb[0].mxu0
        %v667 = vadd.f32 %v594, %v666
        %v668 = vpop.f32.mrb[0].mxu0
        %669 = vdwg.mxu0
        %670 = vmatprep.subr.mxu0 0.0
        %671 = vmatpush1.msra.mxu0 %v583
        %672 = vmatprep.subr.mxu0 0.0
        %673 = vmatpush1.msra.mxu0 %v584
        %674 = vmatprep.subr.mxu0 0.0
        %675 = vmatpush1.msra.mxu0 0.0
        %676 = vmatprep.subr.mxu0 0.0
        %677 = vmatpush1.msra.mxu0 0.0
        %678 = vmatprep.subr.mxu0 0.0
        %679 = vmatpush1.msra.mxu0 0.0
        %680 = vmatprep.subr.mxu0 0.0
        %681 = vmatpush1.msra.mxu0 0.0
        %682 = vmatprep.subr.mxu0 0.0
        %683 = vmatpush1.msra.mxu0 0.0
        %684 = vmatprep.subr.mxu0 0.0
        %685 = vmatpush1.msra.mxu0 0.0
        %686 = vmatprep.subr.mxu0 0.0
        %687 = vmatpush1.msra.mxu0 0.0
        %688 = vmatprep.subr.mxu0 0.0
        %689 = vmatpush1.msra.mxu0 0.0
        %690 = vmatprep.subr.mxu0 0.0
        %691 = vmatpush1.msra.mxu0 0.0
        %692 = vmatprep.subr.mxu0 0.0
        %693 = vmatpush1.msra.mxu0 0.0
        %694 = vmatprep.subr.mxu0 0.0
        %695 = vmatpush1.msra.mxu0 0.0
        %696 = vmatprep.subr.mxu0 0.0
        %697 = vmatpush1.msra.mxu0 0.0
        %698 = vmatprep.subr.mxu0 0.0
        %699 = vmatpush1.msra.mxu0 0.0
        %700 = vmatprep.subr.mxu0 0.0
        %701 = vmatpush1.msra.mxu0 0.0
        %702 = vmatprep.subr.mxu0 0.0
        %703 = vmatpush1.msra.mxu0 0.0
        %704 = vmatprep.subr.mxu0 0.0
        %705 = vmatpush1.msra.mxu0 0.0
        %706 = vmatprep.subr.mxu0 0.0
        %707 = vmatpush1.msra.mxu0 0.0
        %708 = vmatprep.subr.mxu0 0.0
        %709 = vmatpush1.msra.mxu0 0.0
        %710 = vmatprep.subr.mxu0 0.0
        %711 = vmatpush1.msra.mxu0 0.0
        %712 = vmatprep.subr.mxu0 0.0
        %713 = vmatpush1.msra.mxu0 0.0
        %714 = vmatprep.subr.mxu0 0.0
        %715 = vmatpush1.msra.mxu0 0.0
        %716 = vmatprep.subr.mxu0 0.0
        %717 = vmatpush1.msra.mxu0 0.0
        %718 = vmatprep.subr.mxu0 0.0
        %719 = vmatpush1.msra.mxu0 0.0
        %720 = vmatprep.subr.mxu0 0.0
        %721 = vmatpush1.msra.mxu0 0.0
        %722 = vmatprep.subr.mxu0 0.0
        %723 = vmatpush1.msra.mxu0 0.0
        %724 = vmatprep.subr.mxu0 0.0
        %725 = vmatpush1.msra.mxu0 0.0
        %726 = vmatprep.subr.mxu0 0.0
        %727 = vmatpush1.msra.mxu0 0.0
        %728 = vmatprep.subr.mxu0 0.0
        %729 = vmatpush1.msra.mxu0 0.0
        %730 = vmatprep.subr.mxu0 0.0
        %731 = vmatpush1.msra.mxu0 0.0
        %732 = vmatprep.subr.mxu0 0.0
        %733 = vmatpush1.msra.mxu0 0.0
        %734 = vmatprep.mubr.f32.mxu0 0.0
        %735 = vmatmul.mubr.f32.gmra.mrb[0].mxu0 %v598
        %v736 = vpop.f32.mrb[0].mxu0
        %v737 = vadd.f32 %v594, %v736
        %v738 = vpop.f32.mrb[0].mxu0
        %739 = vdwg.mxu0
        %740 = vmatprep.subr.mxu0 0.0
        %741 = vmatpush1.msra.mxu0 %v585
        %742 = vmatprep.subr.mxu0 0.0
        %743 = vmatpush1.msra.mxu0 %v586
        %744 = vmatprep.subr.mxu0 0.0
        %745 = vmatpush1.msra.mxu0 0.0
        %746 = vmatprep.subr.mxu0 0.0
        %747 = vmatpush1.msra.mxu0 0.0
        %748 = vmatprep.subr.mxu0 0.0
        %749 = vmatpush1.msra.mxu0 0.0
        %750 = vmatprep.subr.mxu0 0.0
        %751 = vmatpush1.msra.mxu0 0.0
        %752 = vmatprep.subr.mxu0 0.0
        %753 = vmatpush1.msra.mxu0 0.0
        %754 = vmatprep.subr.mxu0 0.0
        %755 = vmatpush1.msra.mxu0 0.0
        %756 = vmatprep.subr.mxu0 0.0
        %757 = vmatpush1.msra.mxu0 0.0
        %758 = vmatprep.subr.mxu0 0.0
        %759 = vmatpush1.msra.mxu0 0.0
        %760 = vmatprep.subr.mxu0 0.0
        %761 = vmatpush1.msra.mxu0 0.0
        %762 = vmatprep.subr.mxu0 0.0
        %763 = vmatpush1.msra.mxu0 0.0
        %764 = vmatprep.subr.mxu0 0.0
        %765 = vmatpush1.msra.mxu0 0.0
        %766 = vmatprep.subr.mxu0 0.0
        %767 = vmatpush1.msra.mxu0 0.0
        %768 = vmatprep.subr.mxu0 0.0
        %769 = vmatpush1.msra.mxu0 0.0
        %770 = vmatprep.subr.mxu0 0.0
        %771 = vmatpush1.msra.mxu0 0.0
        %772 = vmatprep.subr.mxu0 0.0
        %773 = vmatpush1.msra.mxu0 0.0
        %774 = vmatprep.subr.mxu0 0.0
        %775 = vmatpush1.msra.mxu0 0.0
        %776 = vmatprep.subr.mxu0 0.0
        %777 = vmatpush1.msra.mxu0 0.0
        %778 = vmatprep.subr.mxu0 0.0
        %779 = vmatpush1.msra.mxu0 0.0
        %780 = vmatprep.subr.mxu0 0.0
        %781 = vmatpush1.msra.mxu0 0.0
        %782 = vmatprep.subr.mxu0 0.0
        %783 = vmatpush1.msra.mxu0 0.0
        %784 = vmatprep.subr.mxu0 0.0
        %785 = vmatpush1.msra.mxu0 0.0
        %786 = vmatprep.subr.mxu0 0.0
        %787 = vmatpush1.msra.mxu0 0.0
        %788 = vmatprep.subr.mxu0 0.0
        %789 = vmatpush1.msra.mxu0 0.0
        %790 = vmatprep.subr.mxu0 0.0
        %791 = vmatpush1.msra.mxu0 0.0
        %792 = vmatprep.subr.mxu0 0.0
        %793 = vmatpush1.msra.mxu0 0.0
        %794 = vmatprep.subr.mxu0 0.0
        %795 = vmatpush1.msra.mxu0 0.0
        %796 = vmatprep.subr.mxu0 0.0
        %797 = vmatpush1.msra.mxu0 0.0
        %798 = vmatprep.subr.mxu0 0.0
        %799 = vmatpush1.msra.mxu0 0.0
        %800 = vmatprep.subr.mxu0 0.0
        %801 = vmatpush1.msra.mxu0 0.0
        %802 = vmatprep.subr.mxu0 0.0
        %803 = vmatpush1.msra.mxu0 0.0
        %804 = vmatprep.mubr.f32.mxu0 0.0
        %805 = vmatmul.mubr.f32.gmra.mrb[0].mxu0 %v598
        %v806 = vpop.f32.mrb[0].mxu0
        %v807 = vadd.f32 %v594, %v806
        %v808 = vpop.f32.mrb[0].mxu0
        %809 = vdwg.mxu0
        %810 = vmatprep.subr.mxu0 0.0
        %811 = vmatpush1.msra.mxu0 %v587
        %812 = vmatprep.subr.mxu0 0.0
        %813 = vmatpush1.msra.mxu0 %v588
        %814 = vmatprep.subr.mxu0 0.0
        %815 = vmatpush1.msra.mxu0 0.0
        %816 = vmatprep.subr.mxu0 0.0
        %817 = vmatpush1.msra.mxu0 0.0
        %818 = vmatprep.subr.mxu0 0.0
        %819 = vmatpush1.msra.mxu0 0.0
        %820 = vmatprep.subr.mxu0 0.0
        %821 = vmatpush1.msra.mxu0 0.0
        %822 = vmatprep.subr.mxu0 0.0
        %823 = vmatpush1.msra.mxu0 0.0
        %824 = vmatprep.subr.mxu0 0.0
        %825 = vmatpush1.msra.mxu0 0.0
        %826 = vmatprep.subr.mxu0 0.0
        %827 = vmatpush1.msra.mxu0 0.0
        %828 = vmatprep.subr.mxu0 0.0
        %829 = vmatpush1.msra.mxu0 0.0
        %830 = vmatprep.subr.mxu0 0.0
        %831 = vmatpush1.msra.mxu0 0.0
        %832 = vmatprep.subr.mxu0 0.0
        %833 = vmatpush1.msra.mxu0 0.0
        %834 = vmatprep.subr.mxu0 0.0
        %835 = vmatpush1.msra.mxu0 0.0
        %836 = vmatprep.subr.mxu0 0.0
        %837 = vmatpush1.msra.mxu0 0.0
        %838 = vmatprep.subr.mxu0 0.0
        %839 = vmatpush1.msra.mxu0 0.0
        %840 = vmatprep.subr.mxu0 0.0
        %841 = vmatpush1.msra.mxu0 0.0
        %842 = vmatprep.subr.mxu0 0.0
        %843 = vmatpush1.msra.mxu0 0.0
        %844 = vmatprep.subr.mxu0 0.0
        %845 = vmatpush1.msra.mxu0 0.0
        %846 = vmatprep.subr.mxu0 0.0
        %847 = vmatpush1.msra.mxu0 0.0
        %848 = vmatprep.subr.mxu0 0.0
        %849 = vmatpush1.msra.mxu0 0.0
        %850 = vmatprep.subr.mxu0 0.0
        %851 = vmatpush1.msra.mxu0 0.0
        %852 = vmatprep.subr.mxu0 0.0
        %853 = vmatpush1.msra.mxu0 0.0
        %854 = vmatprep.subr.mxu0 0.0
        %855 = vmatpush1.msra.mxu0 0.0
        %856 = vmatprep.subr.mxu0 0.0
        %857 = vmatpush1.msra.mxu0 0.0
        %858 = vmatprep.subr.mxu0 0.0
        %859 = vmatpush1.msra.mxu0 0.0
        %860 = vmatprep.subr.mxu0 0.0
        %861 = vmatpush1.msra.mxu0 0.0
        %862 = vmatprep.subr.mxu0 0.0
        %863 = vmatpush1.msra.mxu0 0.0
        %864 = vmatprep.subr.mxu0 0.0
        %865 = vmatpush1.msra.mxu0 0.0
        %866 = vmatprep.subr.mxu0 0.0
        %867 = vmatpush1.msra.mxu0 0.0
        %868 = vmatprep.subr.mxu0 0.0
        %869 = vmatpush1.msra.mxu0 0.0
        %870 = vmatprep.subr.mxu0 0.0
        %871 = vmatpush1.msra.mxu0 0.0
        %872 = vmatprep.subr.mxu0 0.0
        %873 = vmatpush1.msra.mxu0 0.0
        %874 = vmatprep.mubr.f32.mxu0 0.0
        %875 = vmatmul.mubr.f32.gmra.mrb[0].mxu0 %v598
        %v876 = vpop.f32.mrb[0].mxu0
        %v877 = vadd.f32 %v594, %v876
        %v878 = vpop.f32.mrb[0].mxu0
        %879 = vdwg.mxu0
        %v880 = vmul.f32 %v667, %v667
        %v881 = vmul.f32 %v737, %v737
        %v882 = vmul.f32 %v807, %v807
        %v883 = vmul.f32 %v877, %v877
        %v884 = vmul.f32 %v667, %v880
        %v885 = vmul.f32 %v737, %v881
        %v886 = vmul.f32 %v807, %v882
        %v887 = vmul.f32 %v877, %v883
        %v888 = vmul.f32 %v884, 0.044715
        %v889 = vmul.f32 %v885, 0.044715
        %v890 = vmul.f32 %v886, 0.044715
        %v891 = vmul.f32 %v887, 0.044715
        %v892 = vadd.f32 %v667, %v888
        %v893 = vadd.f32 %v737, %v889
        %v894 = vadd.f32 %v807, %v890
        %v895 = vadd.f32 %v877, %v891
        %v896 = vmul.f32 %v892, 0.7978846
        %v897 = vmul.f32 %v893, 0.7978846
        %v898 = vmul.f32 %v894, 0.7978846
        %v899 = vmul.f32 %v895, 0.7978846
        %v900 = vtanh.pop %v896
        %v901 = vtanh.pop %v897
        %v902 = vtanh.pop %v898
        %v903 = vtanh.pop %v899
        %v904 = vadd.f32 %v900, 1.0
        %v905 = vadd.f32 %v901, 1.0
        %v906 = vadd.f32 %v902, 1.0
        %v907 = vadd.f32 %v903, 1.0
        %v908 = vmul.f32 %v904, 0.5
        %v909 = vmul.f32 %v905, 0.5
        %v910 = vmul.f32 %v906, 0.5
        %v911 = vmul.f32 %v907, 0.5
        %v912 = vmul.f32 %v667, %v908
        %v913 = vmul.f32 %v737, %v909
        %v914 = vmul.f32 %v807, %v910
        %v915 = vmul.f32 %v877, %v911
        %v916 = vld [vmem:[%s5] sm:$0xff]
        %v917 = vld [vmem:[%s5 + $0x8] sm:$0xff]
        %vm918 = vcmask 64512
        %v920 = vsel %vm918, %v916, 0
        %v923 = vsel %vm918, %v917, 0
        %925 = vmatprep.subr.mxu0 0.0
        %926 = vmatpush1.msra.mxu0 %v912
        %927 = vmatprep.subr.mxu0 0.0
        %928 = vmatpush1.msra.mxu0 0.0
        %929 = vmatprep.subr.mxu0 0.0
        %930 = vmatpush1.msra.mxu0 0.0
        %931 = vmatprep.subr.mxu0 0.0
        %932 = vmatpush1.msra.mxu0 0.0
        %933 = vmatprep.subr.mxu0 0.0
        %934 = vmatpush1.msra.mxu0 0.0
        %935 = vmatprep.subr.mxu0 0.0
        %936 = vmatpush1.msra.mxu0 0.0
        %937 = vmatprep.subr.mxu0 0.0
        %938 = vmatpush1.msra.mxu0 0.0
        %939 = vmatprep.subr.mxu0 0.0
        %940 = vmatpush1.msra.mxu0 0.0
        %941 = vmatprep.subr.mxu0 0.0
        %942 = vmatpush1.msra.mxu0 0.0
        %943 = vmatprep.subr.mxu0 0.0
        %944 = vmatpush1.msra.mxu0 0.0
        %945 = vmatprep.subr.mxu0 0.0
        %946 = vmatpush1.msra.mxu0 0.0
        %947 = vmatprep.subr.mxu0 0.0
        %948 = vmatpush1.msra.mxu0 0.0
        %949 = vmatprep.subr.mxu0 0.0
        %950 = vmatpush1.msra.mxu0 0.0
        %951 = vmatprep.subr.mxu0 0.0
        %952 = vmatpush1.msra.mxu0 0.0
        %953 = vmatprep.subr.mxu0 0.0
        %954 = vmatpush1.msra.mxu0 0.0
        %955 = vmatprep.subr.mxu0 0.0
        %956 = vmatpush1.msra.mxu0 0.0
        %957 = vmatprep.subr.mxu0 0.0
        %958 = vmatpush1.msra.mxu0 0.0
        %959 = vmatprep.subr.mxu0 0.0
        %960 = vmatpush1.msra.mxu0 0.0
        %961 = vmatprep.subr.mxu0 0.0
        %962 = vmatpush1.msra.mxu0 0.0
        %963 = vmatprep.subr.mxu0 0.0
        %964 = vmatpush1.msra.mxu0 0.0
        %965 = vmatprep.subr.mxu0 0.0
        %966 = vmatpush1.msra.mxu0 0.0
        %967 = vmatprep.subr.mxu0 0.0
        %968 = vmatpush1.msra.mxu0 0.0
        %969 = vmatprep.subr.mxu0 0.0
        %970 = vmatpush1.msra.mxu0 0.0
        %971 = vmatprep.subr.mxu0 0.0
        %972 = vmatpush1.msra.mxu0 0.0
        %973 = vmatprep.subr.mxu0 0.0
        %974 = vmatpush1.msra.mxu0 0.0
        %975 = vmatprep.subr.mxu0 0.0
        %976 = vmatpush1.msra.mxu0 0.0
        %977 = vmatprep.subr.mxu0 0.0
        %978 = vmatpush1.msra.mxu0 0.0
        %979 = vmatprep.subr.mxu0 0.0
        %980 = vmatpush1.msra.mxu0 0.0
        %981 = vmatprep.subr.mxu0 0.0
        %982 = vmatpush1.msra.mxu0 0.0
        %983 = vmatprep.subr.mxu0 0.0
        %984 = vmatpush1.msra.mxu0 0.0
        %985 = vmatprep.subr.mxu0 0.0
        %986 = vmatpush1.msra.mxu0 0.0
        %987 = vmatprep.subr.mxu0 0.0
        %988 = vmatpush1.msra.mxu0 0.0
        %989 = vmatprep.mubr.f32.mxu0 0.0
        %990 = vmatmul.mubr.f32.gmra.mrb[0].mxu0 %v920
        %v991 = vpop.f32.mrb[0].mxu0
        %v992 = vadd.f32 0.0, %v991
        %v993 = vpop.f32.mrb[0].mxu0
        %994 = vmatprep.mubr.f32.mxu0 0.0
        %995 = vmatmul.mubr.f32.gmra.mrb[0].mxu0 %v923
        %v996 = vpop.f32.mrb[0].mxu0
        %v997 = vadd.f32 0.0, %v996
        %v998 = vpop.f32.mrb[0].mxu0
        %999 = vdwg.mxu0
        %1000 = vmatprep.subr.mxu0 0.0
        %1001 = vmatpush1.msra.mxu0 %v913
        %1002 = vmatprep.subr.mxu0 0.0
        %1003 = vmatpush1.msra.mxu0 0.0
        %1004 = vmatprep.subr.mxu0 0.0
        %1005 = vmatpush1.msra.mxu0 0.0
        %1006 = vmatprep.subr.mxu0 0.0
        %1007 = vmatpush1.msra.mxu0 0.0
        %1008 = vmatprep.subr.mxu0 0.0
        %1009 = vmatpush1.msra.mxu0 0.0
        %1010 = vmatprep.subr.mxu0 0.0
        %1011 = vmatpush1.msra.mxu0 0.0
        %1012 = vmatprep.subr.mxu0 0.0
        %1013 = vmatpush1.msra.mxu0 0.0
        %1014 = vmatprep.subr.mxu0 0.0
        %1015 = vmatpush1.msra.mxu0 0.0
        %1016 = vmatprep.subr.mxu0 0.0
        %1017 = vmatpush1.msra.mxu0 0.0
        %1018 = vmatprep.subr.mxu0 0.0
        %1019 = vmatpush1.msra.mxu0 0.0
        %1020 = vmatprep.subr.mxu0 0.0
        %1021 = vmatpush1.msra.mxu0 0.0
        %1022 = vmatprep.subr.mxu0 0.0
        %1023 = vmatpush1.msra.mxu0 0.0
        %1024 = vmatprep.subr.mxu0 0.0
        %1025 = vmatpush1.msra.mxu0 0.0
        %1026 = vmatprep.subr.mxu0 0.0
        %1027 = vmatpush1.msra.mxu0 0.0
        %1028 = vmatprep.subr.mxu0 0.0
        %1029 = vmatpush1.msra.mxu0 0.0
        %1030 = vmatprep.subr.mxu0 0.0
        %1031 = vmatpush1.msra.mxu0 0.0
        %1032 = vmatprep.subr.mxu0 0.0
        %1033 = vmatpush1.msra.mxu0 0.0
        %1034 = vmatprep.subr.mxu0 0.0
        %1035 = vmatpush1.msra.mxu0 0.0
        %1036 = vmatprep.subr.mxu0 0.0
        %1037 = vmatpush1.msra.mxu0 0.0
        %1038 = vmatprep.subr.mxu0 0.0
        %1039 = vmatpush1.msra.mxu0 0.0
        %1040 = vmatprep.subr.mxu0 0.0
        %1041 = vmatpush1.msra.mxu0 0.0
        %1042 = vmatprep.subr.mxu0 0.0
        %1043 = vmatpush1.msra.mxu0 0.0
        %1044 = vmatprep.subr.mxu0 0.0
        %1045 = vmatpush1.msra.mxu0 0.0
        %1046 = vmatprep.subr.mxu0 0.0
        %1047 = vmatpush1.msra.mxu0 0.0
        %1048 = vmatprep.subr.mxu0 0.0
        %1049 = vmatpush1.msra.mxu0 0.0
        %1050 = vmatprep.subr.mxu0 0.0
        %1051 = vmatpush1.msra.mxu0 0.0
        %1052 = vmatprep.subr.mxu0 0.0
        %1053 = vmatpush1.msra.mxu0 0.0
        %1054 = vmatprep.subr.mxu0 0.0
        %1055 = vmatpush1.msra.mxu0 0.0
        %1056 = vmatprep.subr.mxu0 0.0
        %1057 = vmatpush1.msra.mxu0 0.0
        %1058 = vmatprep.subr.mxu0 0.0
        %1059 = vmatpush1.msra.mxu0 0.0
        %1060 = vmatprep.subr.mxu0 0.0
        %1061 = vmatpush1.msra.mxu0 0.0
        %1062 = vmatprep.subr.mxu0 0.0
        %1063 = vmatpush1.msra.mxu0 0.0
        %1064 = vmatprep.mubr.f32.mxu0 0.0
        %1065 = vmatmul.mubr.f32.gmra.mrb[0].mxu0 %v920
        %v1066 = vpop.f32.mrb[0].mxu0
        %v1067 = vadd.f32 0.0, %v1066
        %v1068 = vpop.f32.mrb[0].mxu0
        %1069 = vmatprep.mubr.f32.mxu0 0.0
        %1070 = vmatmul.mubr.f32.gmra.mrb[0].mxu0 %v923
        %v1071 = vpop.f32.mrb[0].mxu0
        %v1072 = vadd.f32 0.0, %v1071
        %v1073 = vpop.f32.mrb[0].mxu0
        %1074 = vdwg.mxu0
        %1075 = vmatprep.subr.mxu0 0.0
        %1076 = vmatpush1.msra.mxu0 %v914
        %1077 = vmatprep.subr.mxu0 0.0
        %1078 = vmatpush1.msra.mxu0 0.0
        %1079 = vmatprep.subr.mxu0 0.0
        %1080 = vmatpush1.msra.mxu0 0.0
        %1081 = vmatprep.subr.mxu0 0.0
        %1082 = vmatpush1.msra.mxu0 0.0
        %1083 = vmatprep.subr.mxu0 0.0
        %1084 = vmatpush1.msra.mxu0 0.0
        %1085 = vmatprep.subr.mxu0 0.0
        %1086 = vmatpush1.msra.mxu0 0.0
        %1087 = vmatprep.subr.mxu0 0.0
        %1088 = vmatpush1.msra.mxu0 0.0
        %1089 = vmatprep.subr.mxu0 0.0
        %1090 = vmatpush1.msra.mxu0 0.0
        %1091 = vmatprep.subr.mxu0 0.0
        %1092 = vmatpush1.msra.mxu0 0.0
        %1093 = vmatprep.subr.mxu0 0.0
        %1094 = vmatpush1.msra.mxu0 0.0
        %1095 = vmatprep.subr.mxu0 0.0
        %1096 = vmatpush1.msra.mxu0 0.0
        %1097 = vmatprep.subr.mxu0 0.0
        %1098 = vmatpush1.msra.mxu0 0.0
        %1099 = vmatprep.subr.mxu0 0.0
        %1100 = vmatpush1.msra.mxu0 0.0
        %1101 = vmatprep.subr.mxu0 0.0
        %1102 = vmatpush1.msra.mxu0 0.0
        %1103 = vmatprep.subr.mxu0 0.0
        %1104 = vmatpush1.msra.mxu0 0.0
        %1105 = vmatprep.subr.mxu0 0.0
        %1106 = vmatpush1.msra.mxu0 0.0
        %1107 = vmatprep.subr.mxu0 0.0
        %1108 = vmatpush1.msra.mxu0 0.0
        %1109 = vmatprep.subr.mxu0 0.0
        %1110 = vmatpush1.msra.mxu0 0.0
        %1111 = vmatprep.subr.mxu0 0.0
        %1112 = vmatpush1.msra.mxu0 0.0
        %1113 = vmatprep.subr.mxu0 0.0
        %1114 = vmatpush1.msra.mxu0 0.0
        %1115 = vmatprep.subr.mxu0 0.0
        %1116 = vmatpush1.msra.mxu0 0.0
        %1117 = vmatprep.subr.mxu0 0.0
        %1118 = vmatpush1.msra.mxu0 0.0
        %1119 = vmatprep.subr.mxu0 0.0
        %1120 = vmatpush1.msra.mxu0 0.0
        %1121 = vmatprep.subr.mxu0 0.0
        %1122 = vmatpush1.msra.mxu0 0.0
        %1123 = vmatprep.subr.mxu0 0.0
        %1124 = vmatpush1.msra.mxu0 0.0
        %1125 = vmatprep.subr.mxu0 0.0
        %1126 = vmatpush1.msra.mxu0 0.0
        %1127 = vmatprep.subr.mxu0 0.0
        %1128 = vmatpush1.msra.mxu0 0.0
        %1129 = vmatprep.subr.mxu0 0.0
        %1130 = vmatpush1.msra.mxu0 0.0
        %1131 = vmatprep.subr.mxu0 0.0
        %1132 = vmatpush1.msra.mxu0 0.0
        %1133 = vmatprep.subr.mxu0 0.0
        %1134 = vmatpush1.msra.mxu0 0.0
        %1135 = vmatprep.subr.mxu0 0.0
        %1136 = vmatpush1.msra.mxu0 0.0
        %1137 = vmatprep.subr.mxu0 0.0
        %1138 = vmatpush1.msra.mxu0 0.0
        %1139 = vmatprep.mubr.f32.mxu0 0.0
        %1140 = vmatmul.mubr.f32.gmra.mrb[0].mxu0 %v920
        %v1141 = vpop.f32.mrb[0].mxu0
        %v1142 = vadd.f32 0.0, %v1141
        %v1143 = vpop.f32.mrb[0].mxu0
        %1144 = vmatprep.mubr.f32.mxu0 0.0
        %1145 = vmatmul.mubr.f32.gmra.mrb[0].mxu0 %v923
        %v1146 = vpop.f32.mrb[0].mxu0
        %v1147 = vadd.f32 0.0, %v1146
        %v1148 = vpop.f32.mrb[0].mxu0
        %1149 = vdwg.mxu0
        %1150 = vmatprep.subr.mxu0 0.0
        %1151 = vmatpush1.msra.mxu0 %v915
        %1152 = vmatprep.subr.mxu0 0.0
        %1153 = vmatpush1.msra.mxu0 0.0
        %1154 = vmatprep.subr.mxu0 0.0
        %1155 = vmatpush1.msra.mxu0 0.0
        %1156 = vmatprep.subr.mxu0 0.0
        %1157 = vmatpush1.msra.mxu0 0.0
        %1158 = vmatprep.subr.mxu0 0.0
        %1159 = vmatpush1.msra.mxu0 0.0
        %1160 = vmatprep.subr.mxu0 0.0
        %1161 = vmatpush1.msra.mxu0 0.0
        %1162 = vmatprep.subr.mxu0 0.0
        %1163 = vmatpush1.msra.mxu0 0.0
        %1164 = vmatprep.subr.mxu0 0.0
        %1165 = vmatpush1.msra.mxu0 0.0
        %1166 = vmatprep.subr.mxu0 0.0
        %1167 = vmatpush1.msra.mxu0 0.0
        %1168 = vmatprep.subr.mxu0 0.0
        %1169 = vmatpush1.msra.mxu0 0.0
        %1170 = vmatprep.subr.mxu0 0.0
        %1171 = vmatpush1.msra.mxu0 0.0
        %1172 = vmatprep.subr.mxu0 0.0
        %1173 = vmatpush1.msra.mxu0 0.0
        %1174 = vmatprep.subr.mxu0 0.0
        %1175 = vmatpush1.msra.mxu0 0.0
        %1176 = vmatprep.subr.mxu0 0.0
        %1177 = vmatpush1.msra.mxu0 0.0
        %1178 = vmatprep.subr.mxu0 0.0
        %1179 = vmatpush1.msra.mxu0 0.0
        %1180 = vmatprep.subr.mxu0 0.0
        %1181 = vmatpush1.msra.mxu0 0.0
        %1182 = vmatprep.subr.mxu0 0.0
        %1183 = vmatpush1.msra.mxu0 0.0
        %1184 = vmatprep.subr.mxu0 0.0
        %1185 = vmatpush1.msra.mxu0 0.0
        %1186 = vmatprep.subr.mxu0 0.0
        %1187 = vmatpush1.msra.mxu0 0.0
        %1188 = vmatprep.subr.mxu0 0.0
        %1189 = vmatpush1.msra.mxu0 0.0
        %1190 = vmatprep.subr.mxu0 0.0
        %1191 = vmatpush1.msra.mxu0 0.0
        %1192 = vmatprep.subr.mxu0 0.0
        %1193 = vmatpush1.msra.mxu0 0.0
        %1194 = vmatprep.subr.mxu0 0.0
        %1195 = vmatpush1.msra.mxu0 0.0
        %1196 = vmatprep.subr.mxu0 0.0
        %1197 = vmatpush1.msra.mxu0 0.0
        %1198 = vmatprep.subr.mxu0 0.0
        %1199 = vmatpush1.msra.mxu0 0.0
        %1200 = vmatprep.subr.mxu0 0.0
        %1201 = vmatpush1.msra.mxu0 0.0
        %1202 = vmatprep.subr.mxu0 0.0
        %1203 = vmatpush1.msra.mxu0 0.0
        %1204 = vmatprep.subr.mxu0 0.0
        %1205 = vmatpush1.msra.mxu0 0.0
        %1206 = vmatprep.subr.mxu0 0.0
        %1207 = vmatpush1.msra.mxu0 0.0
        %1208 = vmatprep.subr.mxu0 0.0
        %1209 = vmatpush1.msra.mxu0 0.0
        %1210 = vmatprep.subr.mxu0 0.0
        %1211 = vmatpush1.msra.mxu0 0.0
        %1212 = vmatprep.subr.mxu0 0.0
        %1213 = vmatpush1.msra.mxu0 0.0
        %1214 = vmatprep.mubr.f32.mxu0 0.0
        %1215 = vmatmul.mubr.f32.gmra.mrb[0].mxu0 %v920
        %v1216 = vpop.f32.mrb[0].mxu0
        %v1217 = vadd.f32 0.0, %v1216
        %v1218 = vpop.f32.mrb[0].mxu0
        %1219 = vmatprep.mubr.f32.mxu0 0.0
        %1220 = vmatmul.mubr.f32.gmra.mrb[0].mxu0 %v923
        %v1221 = vpop.f32.mrb[0].mxu0
        %v1222 = vadd.f32 0.0, %v1221
        %v1223 = vpop.f32.mrb[0].mxu0
        %1224 = vdwg.mxu0
        %v1225 = vadd.f32 %v445, %v992
        %v1226 = vadd.f32 %v446, %v997
        %v1227 = vadd.f32 %v447, %v1067
        %v1228 = vadd.f32 %v448, %v1072
        %v1229 = vadd.f32 %v449, %v1142
        %v1230 = vadd.f32 %v450, %v1147
        %v1231 = vadd.f32 %v451, %v1217
        %v1232 = vadd.f32 %v452, %v1222
        %v1233 = vld [vmem:[%s6] sm:$0xff]
        %v1234 = vld [vmem:[%s6 + $0x8] sm:$0xff]
        %1236 = vset.pattern.permute.xlu0 0
        %1237 = vperm.xlu0 %1236, %v1233
        %v1238 = vpop.permute.xlu0 %1237
        %1241 = vset.pattern.permute.xlu0 0
        %1242 = vperm.xlu0 %1241, %v1234
        %v1243 = vpop.permute.xlu0 %1242
        %v1245 = vadd.f32 %v1225, %v1238
        %v1246 = vadd.f32 %v1226, %v1243
        %v1247 = vadd.f32 %v1227, %v1238
        %v1248 = vadd.f32 %v1228, %v1243
        %v1249 = vadd.f32 %v1229, %v1238
        %v1250 = vadd.f32 %v1230, %v1243
        %v1251 = vadd.f32 %v1231, %v1238
        %v1252 = vadd.f32 %v1232, %v1243
        %v1253 = vld [vmem:[%s7] sm:$0x1]
        %v1254 = vld [vmem:[%s8] sm:$0x1]
        %v1255 = vsel %vm455, %v1245, 0.0
        %1256 = vadd.xlane.f32.xlu0 %v1255
        %v1257 = vpop.xlane.xlu0 %1256
        %v1258 = vsel %vm455, %v1246, 0.0
        %1259 = vadd.xlane.f32.xlu0 %v1258
        %v1260 = vpop.xlane.xlu0 %1259
        %v1261 = vsel %vm455, %v1247, 0.0
        %1262 = vadd.xlane.f32.xlu0 %v1261
        %v1263 = vpop.xlane.xlu0 %1262
        %v1264 = vsel %vm455, %v1248, 0.0
        %1265 = vadd.xlane.f32.xlu0 %v1264
        %v1266 = vpop.xlane.xlu0 %1265
        %v1267 = vsel %vm455, %v1249, 0.0
        %1268 = vadd.xlane.f32.xlu0 %v1267
        %v1269 = vpop.xlane.xlu0 %1268
        %v1270 = vsel %vm455, %v1250, 0.0
        %1271 = vadd.xlane.f32.xlu0 %v1270
        %v1272 = vpop.xlane.xlu0 %1271
        %v1273 = vsel %vm455, %v1251, 0.0
        %1274 = vadd.xlane.f32.xlu0 %v1273
        %v1275 = vpop.xlane.xlu0 %1274
        %v1276 = vsel %vm455, %v1252, 0.0
        %1277 = vadd.xlane.f32.xlu0 %v1276
        %v1278 = vpop.xlane.xlu0 %1277
        %v1279 = vmul.f32 %v1257, %v480
        %v1280 = vmul.f32 %v1260, %v480
        %v1281 = vmul.f32 %v1263, %v480
        %v1282 = vmul.f32 %v1266, %v480
        %v1283 = vmul.f32 %v1269, %v480
        %v1284 = vmul.f32 %v1272, %v480
        %v1285 = vmul.f32 %v1275, %v480
        %v1286 = vmul.f32 %v1278, %v480
        %v1287 = vsub.f32 %v1245, %v1279
        %v1288 = vsub.f32 %v1246, %v1280
        %v1289 = vsub.f32 %v1247, %v1281
        %v1290 = vsub.f32 %v1248, %v1282
        %v1291 = vsub.f32 %v1249, %v1283
        %v1292 = vsub.f32 %v1250, %v1284
        %v1293 = vsub.f32 %v1251, %v1285
        %v1294 = vsub.f32 %v1252, %v1286
        %v1295 = vmul.f32 %v1287, %v1287
        %v1296 = vmul.f32 %v1288, %v1288
        %v1297 = vmul.f32 %v1289, %v1289
        %v1298 = vmul.f32 %v1290, %v1290
        %v1299 = vmul.f32 %v1291, %v1291
        %v1300 = vmul.f32 %v1292, %v1292
        %v1301 = vmul.f32 %v1293, %v1293
        %v1302 = vmul.f32 %v1294, %v1294
        %v1303 = vsel %vm455, %v1295, 0.0
        %1304 = vadd.xlane.f32.xlu0 %v1303
        %v1305 = vpop.xlane.xlu0 %1304
        %v1306 = vsel %vm455, %v1296, 0.0
        %1307 = vadd.xlane.f32.xlu0 %v1306
        %v1308 = vpop.xlane.xlu0 %1307
        %v1309 = vsel %vm455, %v1297, 0.0
        %1310 = vadd.xlane.f32.xlu0 %v1309
        %v1311 = vpop.xlane.xlu0 %1310
        %v1312 = vsel %vm455, %v1298, 0.0
        %1313 = vadd.xlane.f32.xlu0 %v1312
        %v1314 = vpop.xlane.xlu0 %1313
        %v1315 = vsel %vm455, %v1299, 0.0
        %1316 = vadd.xlane.f32.xlu0 %v1315
        %v1317 = vpop.xlane.xlu0 %1316
        %v1318 = vsel %vm455, %v1300, 0.0
        %1319 = vadd.xlane.f32.xlu0 %v1318
        %v1320 = vpop.xlane.xlu0 %1319
        %v1321 = vsel %vm455, %v1301, 0.0
        %1322 = vadd.xlane.f32.xlu0 %v1321
        %v1323 = vpop.xlane.xlu0 %1322
        %v1324 = vsel %vm455, %v1302, 0.0
        %1325 = vadd.xlane.f32.xlu0 %v1324
        %v1326 = vpop.xlane.xlu0 %1325
        %v1327 = vmul.f32 %v1305, %v480
        %v1328 = vmul.f32 %v1308, %v480
        %v1329 = vmul.f32 %v1311, %v480
        %v1330 = vmul.f32 %v1314, %v480
        %v1331 = vmul.f32 %v1317, %v480
        %v1332 = vmul.f32 %v1320, %v480
        %v1333 = vmul.f32 %v1323, %v480
        %v1334 = vmul.f32 %v1326, %v480
        %v1335 = vadd.f32 %v1327, 1e-05
        %v1336 = vadd.f32 %v1328, 1e-05
        %v1337 = vadd.f32 %v1329, 1e-05
        %v1338 = vadd.f32 %v1330, 1e-05
        %v1339 = vadd.f32 %v1331, 1e-05
        %v1340 = vadd.f32 %v1332, 1e-05
        %v1341 = vadd.f32 %v1333, 1e-05
        %v1342 = vadd.f32 %v1334, 1e-05
        %v1343 = vrsqrt.pop %v1335
        %v1344 = vrsqrt.pop %v1336
        %v1345 = vrsqrt.pop %v1337
        %v1346 = vrsqrt.pop %v1338
        %v1347 = vrsqrt.pop %v1339
        %v1348 = vrsqrt.pop %v1340
        %v1349 = vrsqrt.pop %v1341
        %v1350 = vrsqrt.pop %v1342
        %v1351 = vmul.f32 %v1287, %v1343
        %v1352 = vmul.f32 %v1288, %v1344
        %v1353 = vmul.f32 %v1289, %v1345
        %v1354 = vmul.f32 %v1290, %v1346
        %v1355 = vmul.f32 %v1291, %v1347
        %v1356 = vmul.f32 %v1292, %v1348
        %v1357 = vmul.f32 %v1293, %v1349
        %v1358 = vmul.f32 %v1294, %v1350
        %v1360 = vlaneseq
        %v1361 = vshrl.u32 %v1360, 7
        %v1362 = vsub.s32 0, %v1361
        %v1363 = vrot.slane %v1253, %v1362
        %v1365 = vmul.f32 %v1351, %v1363
        %v1366 = vmul.f32 %v1352, %v1363
        %v1367 = vmul.f32 %v1353, %v1363
        %v1368 = vmul.f32 %v1354, %v1363
        %v1369 = vmul.f32 %v1355, %v1363
        %v1370 = vmul.f32 %v1356, %v1363
        %v1371 = vmul.f32 %v1357, %v1363
        %v1372 = vmul.f32 %v1358, %v1363
        %v1374 = vlaneseq
        %v1375 = vshrl.u32 %v1374, 7
        %v1376 = vsub.s32 0, %v1375
        %v1377 = vrot.slane %v1254, %v1376
        %v1379 = vadd.f32 %v1365, %v1377
        %v1380 = vadd.f32 %v1366, %v1377
        %v1381 = vadd.f32 %v1367, %v1377
        %v1382 = vadd.f32 %v1368, %v1377
        %v1383 = vadd.f32 %v1369, %v1377
        %v1384 = vadd.f32 %v1370, %v1377
        %v1385 = vadd.f32 %v1371, %v1377
        %v1386 = vadd.f32 %v1372, %v1377
        %v1387 = vld [vmem:[%s9] sm:$0xff]
        %v1388 = vld [vmem:[%s9 + $0x8] sm:$0xff]
        %v1389 = vld [vmem:[%s9 + $0x10] sm:$0xff]
        %v1390 = vld [vmem:[%s9 + $0x18] sm:$0xff]
        %v1391 = vld [vmem:[%s10] sm:$0x1]
        %v1393 = vlaneseq
        %v1394 = vshrl.u32 %v1393, 7
        %v1395 = vsub.s32 0, %v1394
        %v1396 = vrot.slane %v1391, %v1395
        %v1399 = vsel %vm455, %v1379, 0
        %v1402 = vsel %vm455, %v1380, 0
        %v1405 = vsel %vm455, %v1381, 0
        %v1408 = vsel %vm455, %v1382, 0
        %v1411 = vsel %vm455, %v1383, 0
        %v1414 = vsel %vm455, %v1384, 0
        %v1417 = vsel %vm455, %v1385, 0
        %v1420 = vsel %vm455, %v1386, 0
        %1422 = vmatprep.subr.mxu0 0.0
        %1423 = vmatpush1.msra.mxu0 %v1387
        %1424 = vmatprep.subr.mxu0 0.0
        %1425 = vmatpush1.msra.mxu0 %v1388
        %1426 = vmatprep.subr.mxu0 0.0
        %1427 = vmatpush1.msra.mxu0 %v1389
        %1428 = vmatprep.subr.mxu0 0.0
        %1429 = vmatpush1.msra.mxu0 %v1390
        %1430 = vmatprep.subr.mxu0 0.0
        %1431 = vmatpush1.msra.mxu0 0.0
        %1432 = vmatprep.subr.mxu0 0.0
        %1433 = vmatpush1.msra.mxu0 0.0
        %1434 = vmatprep.subr.mxu0 0.0
        %1435 = vmatpush1.msra.mxu0 0.0
        %1436 = vmatprep.subr.mxu0 0.0
        %1437 = vmatpush1.msra.mxu0 0.0
        %1438 = vmatprep.subr.mxu0 0.0
        %1439 = vmatpush1.msra.mxu0 0.0
        %1440 = vmatprep.subr.mxu0 0.0
        %1441 = vmatpush1.msra.mxu0 0.0
        %1442 = vmatprep.subr.mxu0 0.0
        %1443 = vmatpush1.msra.mxu0 0.0
        %1444 = vmatprep.subr.mxu0 0.0
        %1445 = vmatpush1.msra.mxu0 0.0
        %1446 = vmatprep.subr.mxu0 0.0
        %1447 = vmatpush1.msra.mxu0 0.0
        %1448 = vmatprep.subr.mxu0 0.0
        %1449 = vmatpush1.msra.mxu0 0.0
        %1450 = vmatprep.subr.mxu0 0.0
        %1451 = vmatpush1.msra.mxu0 0.0
        %1452 = vmatprep.subr.mxu0 0.0
        %1453 = vmatpush1.msra.mxu0 0.0
        %1454 = vmatprep.subr.mxu0 0.0
        %1455 = vmatpush1.msra.mxu0 0.0
        %1456 = vmatprep.subr.mxu0 0.0
        %1457 = vmatpush1.msra.mxu0 0.0
        %1458 = vmatprep.subr.mxu0 0.0
        %1459 = vmatpush1.msra.mxu0 0.0
        %1460 = vmatprep.subr.mxu0 0.0
        %1461 = vmatpush1.msra.mxu0 0.0
        %1462 = vmatprep.subr.mxu0 0.0
        %1463 = vmatpush1.msra.mxu0 0.0
        %1464 = vmatprep.subr.mxu0 0.0
        %1465 = vmatpush1.msra.mxu0 0.0
        %1466 = vmatprep.subr.mxu0 0.0
        %1467 = vmatpush1.msra.mxu0 0.0
        %1468 = vmatprep.subr.mxu0 0.0
        %1469 = vmatpush1.msra.mxu0 0.0
        %1470 = vmatprep.subr.mxu0 0.0
        %1471 = vmatpush1.msra.mxu0 0.0
        %1472 = vmatprep.subr.mxu0 0.0
        %1473 = vmatpush1.msra.mxu0 0.0
        %1474 = vmatprep.subr.mxu0 0.0
        %1475 = vmatpush1.msra.mxu0 0.0
        %1476 = vmatprep.subr.mxu0 0.0
        %1477 = vmatpush1.msra.mxu0 0.0
        %1478 = vmatprep.subr.mxu0 0.0
        %1479 = vmatpush1.msra.mxu0 0.0
        %1480 = vmatprep.subr.mxu0 0.0
        %1481 = vmatpush1.msra.mxu0 0.0
        %1482 = vmatprep.subr.mxu0 0.0
        %1483 = vmatpush1.msra.mxu0 0.0
        %1484 = vmatprep.subr.mxu0 0.0
        %1485 = vmatpush1.msra.mxu0 0.0
        %1486 = vmatprep.mubr.f32.mxu0 0.0
        %1487 = vmatmul.mubr.f32.gmra.mrb[0].mxu0 %v1399
        %v1488 = vpop.f32.mrb[0].mxu0
        %v1489 = vadd.f32 %v1396, %v1488
        %v1490 = vpop.f32.mrb[0].mxu0
        %1491 = vmatprep.mubr.f32.mxu0 0.0
        %1492 = vmatmul.mubr.f32.gmra.mrb[0].mxu0 %v1402
        %v1493 = vpop.f32.mrb[0].mxu0
        %v1494 = vadd.f32 %v1396, %v1493
        %v1495 = vpop.f32.mrb[0].mxu0
        %1496 = vmatprep.mubr.f32.mxu0 0.0
        %1497 = vmatmul.mubr.f32.gmra.mrb[0].mxu0 %v1405
        %v1498 = vpop.f32.mrb[0].mxu0
        %v1499 = vadd.f32 %v1396, %v1498
        %v1500 = vpop.f32.mrb[0].mxu0
        %1501 = vmatprep.mubr.f32.mxu0 0.0
        %1502 = vmatmul.mubr.f32.gmra.mrb[0].mxu0 %v1408
        %v1503 = vpop.f32.mrb[0].mxu0
        %v1504 = vadd.f32 %v1396, %v1503
        %v1505 = vpop.f32.mrb[0].mxu0
        %1506 = vmatprep.mubr.f32.mxu0 0.0
        %1507 = vmatmul.mubr.f32.gmra.mrb[0].mxu0 %v1411
        %v1508 = vpop.f32.mrb[0].mxu0
        %v1509 = vadd.f32 %v1396, %v1508
        %v1510 = vpop.f32.mrb[0].mxu0
        %1511 = vmatprep.mubr.f32.mxu0 0.0
        %1512 = vmatmul.mubr.f32.gmra.mrb[0].mxu0 %v1414
        %v1513 = vpop.f32.mrb[0].mxu0
        %v1514 = vadd.f32 %v1396, %v1513
        %v1515 = vpop.f32.mrb[0].mxu0
        %1516 = vmatprep.mubr.f32.mxu0 0.0
        %1517 = vmatmul.mubr.f32.gmra.mrb[0].mxu0 %v1417
        %v1518 = vpop.f32.mrb[0].mxu0
        %v1519 = vadd.f32 %v1396, %v1518
        %v1520 = vpop.f32.mrb[0].mxu0
        %1521 = vmatprep.mubr.f32.mxu0 0.0
        %1522 = vmatmul.mubr.f32.gmra.mrb[0].mxu0 %v1420
        %v1523 = vpop.f32.mrb[0].mxu0
        %v1524 = vadd.f32 %v1396, %v1523
        %v1525 = vpop.f32.mrb[0].mxu0
        %1526 = vdwg.mxu0
        %v1527 = vmul.f32 %v1489, %v1489
        %v1528 = vmul.f32 %v1494, %v1494
        %v1529 = vmul.f32 %v1499, %v1499
        %v1530 = vmul.f32 %v1504, %v1504
        %v1531 = vmul.f32 %v1509, %v1509
        %v1532 = vmul.f32 %v1514, %v1514
        %v1533 = vmul.f32 %v1519, %v1519
        %v1534 = vmul.f32 %v1524, %v1524
        %v1535 = vmul.f32 %v1489, %v1527
        %v1536 = vmul.f32 %v1494, %v1528
        %v1537 = vmul.f32 %v1499, %v1529
        %v1538 = vmul.f32 %v1504, %v1530
        %v1539 = vmul.f32 %v1509, %v1531
        %v1540 = vmul.f32 %v1514, %v1532
        %v1541 = vmul.f32 %v1519, %v1533
        %v1542 = vmul.f32 %v1524, %v1534
        %v1543 = vmul.f32 %v1535, 0.044715
        %v1544 = vmul.f32 %v1536, 0.044715
        %v1545 = vmul.f32 %v1537, 0.044715
        %v1546 = vmul.f32 %v1538, 0.044715
        %v1547 = vmul.f32 %v1539, 0.044715
        %v1548 = vmul.f32 %v1540, 0.044715
        %v1549 = vmul.f32 %v1541, 0.044715
        %v1550 = vmul.f32 %v1542, 0.044715
        %v1551 = vadd.f32 %v1489, %v1543
        %v1552 = vadd.f32 %v1494, %v1544
        %v1553 = vadd.f32 %v1499, %v1545
        %v1554 = vadd.f32 %v1504, %v1546
        %v1555 = vadd.f32 %v1509, %v1547
        %v1556 = vadd.f32 %v1514, %v1548
        %v1557 = vadd.f32 %v1519, %v1549
        %v1558 = vadd.f32 %v1524, %v1550
        %v1559 = vmul.f32 %v1551, 0.7978846
        %v1560 = vmul.f32 %v1552, 0.7978846
        %v1561 = vmul.f32 %v1553, 0.7978846
        %v1562 = vmul.f32 %v1554, 0.7978846
        %v1563 = vmul.f32 %v1555, 0.7978846
        %v1564 = vmul.f32 %v1556, 0.7978846
        %v1565 = vmul.f32 %v1557, 0.7978846
        %v1566 = vmul.f32 %v1558, 0.7978846
        %v1567 = vtanh.pop %v1559
        %v1568 = vtanh.pop %v1560
        %v1569 = vtanh.pop %v1561
        %v1570 = vtanh.pop %v1562
        %v1571 = vtanh.pop %v1563
        %v1572 = vtanh.pop %v1564
        %v1573 = vtanh.pop %v1565
        %v1574 = vtanh.pop %v1566
        %v1575 = vadd.f32 %v1567, 1.0
        %v1576 = vadd.f32 %v1568, 1.0
        %v1577 = vadd.f32 %v1569, 1.0
        %v1578 = vadd.f32 %v1570, 1.0
        %v1579 = vadd.f32 %v1571, 1.0
        %v1580 = vadd.f32 %v1572, 1.0
        %v1581 = vadd.f32 %v1573, 1.0
        %v1582 = vadd.f32 %v1574, 1.0
        %v1583 = vmul.f32 %v1575, 0.5
        %v1584 = vmul.f32 %v1576, 0.5
        %v1585 = vmul.f32 %v1577, 0.5
        %v1586 = vmul.f32 %v1578, 0.5
        %v1587 = vmul.f32 %v1579, 0.5
        %v1588 = vmul.f32 %v1580, 0.5
        %v1589 = vmul.f32 %v1581, 0.5
        %v1590 = vmul.f32 %v1582, 0.5
        %v1591 = vmul.f32 %v1489, %v1583
        %v1592 = vmul.f32 %v1494, %v1584
        %v1593 = vmul.f32 %v1499, %v1585
        %v1594 = vmul.f32 %v1504, %v1586
        %v1595 = vmul.f32 %v1509, %v1587
        %v1596 = vmul.f32 %v1514, %v1588
        %v1597 = vmul.f32 %v1519, %v1589
        %v1598 = vmul.f32 %v1524, %v1590
        %v1599 = vld [vmem:[%s11] sm:$0xff]
        %v1600 = vld [vmem:[%s11 + $0x8] sm:$0xff]
        %v1601 = vld [vmem:[%s11 + $0x10] sm:$0xff]
        %v1602 = vld [vmem:[%s11 + $0x18] sm:$0xff]
        %v1603 = vld [vmem:[%s11 + $0x20] sm:$0xff]
        %v1604 = vld [vmem:[%s11 + $0x28] sm:$0xff]
        %v1605 = vld [vmem:[%s11 + $0x30] sm:$0xff]
        %v1606 = vld [vmem:[%s11 + $0x38] sm:$0xff]
        %v1607 = vld [vmem:[%s11 + $0x40] sm:$0xff]
        %v1608 = vld [vmem:[%s11 + $0x48] sm:$0xff]
        %v1609 = vld [vmem:[%s11 + $0x50] sm:$0xff]
        %v1610 = vld [vmem:[%s11 + $0x58] sm:$0xff]
        %v1611 = vld [vmem:[%s11 + $0x60] sm:$0xff]
        %v1612 = vld [vmem:[%s11 + $0x68] sm:$0xff]
        %v1613 = vld [vmem:[%s11 + $0x70] sm:$0xff]
        %v1614 = vld [vmem:[%s11 + $0x78] sm:$0xff]
        %v1615 = vld [vmem:[%s12] sm:$0x1]
        %v1617 = vlaneseq
        %v1618 = vshrl.u32 %v1617, 7
        %v1619 = vsub.s32 0, %v1618
        %v1620 = vrot.slane %v1615, %v1619
        %1622 = vmatprep.subr.mxu0 0.0
        %1623 = vmatpush1.msra.mxu0 %v1599
        %1624 = vmatprep.subr.mxu0 0.0
        %1625 = vmatpush1.msra.mxu0 %v1600
        %1626 = vmatprep.subr.mxu0 0.0
        %1627 = vmatpush1.msra.mxu0 %v1601
        %1628 = vmatprep.subr.mxu0 0.0
        %1629 = vmatpush1.msra.mxu0 %v1602
        %1630 = vmatprep.subr.mxu0 0.0
        %1631 = vmatpush1.msra.mxu0 %v1603
        %1632 = vmatprep.subr.mxu0 0.0
        %1633 = vmatpush1.msra.mxu0 %v1604
        %1634 = vmatprep.subr.mxu0 0.0
        %1635 = vmatpush1.msra.mxu0 %v1605
        %1636 = vmatprep.subr.mxu0 0.0
        %1637 = vmatpush1.msra.mxu0 %v1606
        %1638 = vmatprep.subr.mxu0 0.0
        %1639 = vmatpush1.msra.mxu0 %v1607
        %1640 = vmatprep.subr.mxu0 0.0
        %1641 = vmatpush1.msra.mxu0 %v1608
        %1642 = vmatprep.subr.mxu0 0.0
        %1643 = vmatpush1.msra.mxu0 %v1609
        %1644 = vmatprep.subr.mxu0 0.0
        %1645 = vmatpush1.msra.mxu0 %v1610
        %1646 = vmatprep.subr.mxu0 0.0
        %1647 = vmatpush1.msra.mxu0 %v1611
        %1648 = vmatprep.subr.mxu0 0.0
        %1649 = vmatpush1.msra.mxu0 %v1612
        %1650 = vmatprep.subr.mxu0 0.0
        %1651 = vmatpush1.msra.mxu0 %v1613
        %1652 = vmatprep.subr.mxu0 0.0
        %1653 = vmatpush1.msra.mxu0 %v1614
        %1654 = vmatprep.subr.mxu0 0.0
        %1655 = vmatpush1.msra.mxu0 0.0
        %1656 = vmatprep.subr.mxu0 0.0
        %1657 = vmatpush1.msra.mxu0 0.0
        %1658 = vmatprep.subr.mxu0 0.0
        %1659 = vmatpush1.msra.mxu0 0.0
        %1660 = vmatprep.subr.mxu0 0.0
        %1661 = vmatpush1.msra.mxu0 0.0
        %1662 = vmatprep.subr.mxu0 0.0
        %1663 = vmatpush1.msra.mxu0 0.0
        %1664 = vmatprep.subr.mxu0 0.0
        %1665 = vmatpush1.msra.mxu0 0.0
        %1666 = vmatprep.subr.mxu0 0.0
        %1667 = vmatpush1.msra.mxu0 0.0
        %1668 = vmatprep.subr.mxu0 0.0
        %1669 = vmatpush1.msra.mxu0 0.0
        %1670 = vmatprep.subr.mxu0 0.0
        %1671 = vmatpush1.msra.mxu0 0.0
        %1672 = vmatprep.subr.mxu0 0.0
        %1673 = vmatpush1.msra.mxu0 0.0
        %1674 = vmatprep.subr.mxu0 0.0
        %1675 = vmatpush1.msra.mxu0 0.0
        %1676 = vmatprep.subr.mxu0 0.0
        %1677 = vmatpush1.msra.mxu0 0.0
        %1678 = vmatprep.subr.mxu0 0.0
        %1679 = vmatpush1.msra.mxu0 0.0
        %1680 = vmatprep.subr.mxu0 0.0
        %1681 = vmatpush1.msra.mxu0 0.0
        %1682 = vmatprep.subr.mxu0 0.0
        %1683 = vmatpush1.msra.mxu0 0.0
        %1684 = vmatprep.subr.mxu0 0.0
        %1685 = vmatpush1.msra.mxu0 0.0
        %1686 = vmatprep.mubr.f32.mxu0 0.0
        %1687 = vmatmul.mubr.f32.gmra.mrb[0].mxu0 %v1591
        %v1688 = vpop.f32.mrb[0].mxu0
        %v1689 = vadd.f32 %v1620, %v1688
        %v1690 = vpop.f32.mrb[0].mxu0
        %1691 = vmatprep.mubr.f32.mxu0 0.0
        %1692 = vmatmul.mubr.f32.gmra.mrb[0].mxu0 %v1592
        %v1693 = vpop.f32.mrb[0].mxu0
        %v1694 = vadd.f32 %v1620, %v1693
        %v1695 = vpop.f32.mrb[0].mxu0
        %1696 = vmatprep.mubr.f32.mxu0 0.0
        %1697 = vmatmul.mubr.f32.gmra.mrb[0].mxu0 %v1593
        %v1698 = vpop.f32.mrb[0].mxu0
        %v1699 = vadd.f32 %v1620, %v1698
        %v1700 = vpop.f32.mrb[0].mxu0
        %1701 = vmatprep.mubr.f32.mxu0 0.0
        %1702 = vmatmul.mubr.f32.gmra.mrb[0].mxu0 %v1594
        %v1703 = vpop.f32.mrb[0].mxu0
        %v1704 = vadd.f32 %v1620, %v1703
        %v1705 = vpop.f32.mrb[0].mxu0
        %1706 = vmatprep.mubr.f32.mxu0 0.0
        %1707 = vmatmul.mubr.f32.gmra.mrb[0].mxu0 %v1595
        %v1708 = vpop.f32.mrb[0].mxu0
        %v1709 = vadd.f32 %v1620, %v1708
        %v1710 = vpop.f32.mrb[0].mxu0
        %1711 = vmatprep.mubr.f32.mxu0 0.0
        %1712 = vmatmul.mubr.f32.gmra.mrb[0].mxu0 %v1596
        %v1713 = vpop.f32.mrb[0].mxu0
        %v1714 = vadd.f32 %v1620, %v1713
        %v1715 = vpop.f32.mrb[0].mxu0
        %1716 = vmatprep.mubr.f32.mxu0 0.0
        %1717 = vmatmul.mubr.f32.gmra.mrb[0].mxu0 %v1597
        %v1718 = vpop.f32.mrb[0].mxu0
        %v1719 = vadd.f32 %v1620, %v1718
        %v1720 = vpop.f32.mrb[0].mxu0
        %1721 = vmatprep.mubr.f32.mxu0 0.0
        %1722 = vmatmul.mubr.f32.gmra.mrb[0].mxu0 %v1598
        %v1723 = vpop.f32.mrb[0].mxu0
        %v1724 = vadd.f32 %v1620, %v1723
        %v1725 = vpop.f32.mrb[0].mxu0
        %1726 = vdwg.mxu0
        %v1727 = vadd.f32 %v1245, %v1689
        %v1728 = vadd.f32 %v1246, %v1694
        %v1729 = vadd.f32 %v1247, %v1699
        %v1730 = vadd.f32 %v1248, %v1704
        %v1731 = vadd.f32 %v1249, %v1709
        %v1732 = vadd.f32 %v1250, %v1714
        %v1733 = vadd.f32 %v1251, %v1719
        %v1734 = vadd.f32 %v1252, %v1724
        %1735 = vst.msk [vmem:[%s436] sm:$0xff] %vm455, %v1727
        %1736 = vst.msk [vmem:[%s436 + $0x8] sm:$0xff] %vm455, %v1728
        %1737 = vst.msk [vmem:[%s436 + $0x10] sm:$0xff] %vm455, %v1729
        %1738 = vst.msk [vmem:[%s436 + $0x18] sm:$0xff] %vm455, %v1730
        %1739 = vst.msk [vmem:[%s436 + $0x20] sm:$0xff] %vm455, %v1731
        %1740 = vst.msk [vmem:[%s436 + $0x28] sm:$0xff] %vm455, %v1732
        %1741 = vst.msk [vmem:[%s436 + $0x30] sm:$0xff] %vm455, %v1733
        %1742 = vst.msk [vmem:[%s436 + $0x38] sm:$0xff] %vm455, %v1734
        %s1743 = sand.u32 %s313, 1
        %s1744 = scalar_lea.sflag [#allocation3], %s1743
        %s1745 = sand.u32 %s313, 1
        %s1746 = smul.addr %s1745, 64
        %s1747 = scalar_lea.vmem [#allocation2], %s1746
        // Predicated region
        $region73: #{tpu_custom_call.1} parent=71 // pred_check
          %p1748 = pneg %p323
        $region74: #{tpu_custom_call.1} parent=71 // pred_check_branch
          %1750 = sbr.rel (%p1748) target = $region76
        $region75: #{tpu_custom_call.1} parent=71 // pred_region
          %s1751 = smul.u32 4, %s27
          %s1753 = ssub.s32 1024, 1024
          %1754 = vsyncadd %s1744, %s1753
          %s1755 = smul.addr %s1751, 2
          %s1756 = smul.addr %s1755, 128
          %s1757 = scalar_lea.hbm %s13, %s1756
          %s1758 = sshll.u32 %s1747, 4
          %s1759 = int_to_ptr.vmem [resolvable:$true] %s1758
          %1764 = dma.vmem_to_hbm [thread:$0]  %s1759, 1024, %s1757, %s1744, 128, 128, 8
        $region76: #{tpu_custom_call.1} parent=71 // pred_fallthru
          _
      $region72: #{tpu_custom_call.1} parent=5 // pred_fallthru
        _
      %p1765 = scmp.le.s32.totalorder 2, %s22
      // Predicated region
      $region77: #{tpu_custom_call.1} parent=5 // pred_check
        %p1766 = pneg %p1765
      $region78: #{tpu_custom_call.1} parent=5 // pred_check_branch
        %1768 = sbr.rel (%p1766) target = $region80
      $region79: #{tpu_custom_call.1} parent=5 // pred_region
        %s1769 = ssub.s32 %s22, 2
        // Predicated region
        $region81: #{tpu_custom_call.1} parent=79 // pred_check
          %p1770 = pneg %p329
        $region82: #{tpu_custom_call.1} parent=79 // pred_check_branch
          %1772 = sbr.rel (%p1770) target = $region84
        $region83: #{tpu_custom_call.1} parent=79 // pred_region
          %s1773 = sand.u32 %s314, 1
          %s1774 = scalar_lea.sflag [#allocation3], %s1773
          %s1775 = sand.u32 %s314, 1
          %s1776 = smul.addr %s1775, 64
          %s1777 = scalar_lea.vmem [#allocation2], %s1776
          %1778 = dma.done %s1774, 1024
        $region84: #{tpu_custom_call.1} parent=79 // pred_fallthru
          _
      $region80: #{tpu_custom_call.1} parent=5 // pred_fallthru
        _
    $region6: #{tpu_custom_call.1} parent=1 // loop_footer
      %s26 = sadd.s32 1, %s22
    $region7: #{tpu_custom_call.1} parent=1 // loop_footer_branch
      %21 = sbr.rel target = $region3
    $region8: #{tpu_custom_call.1} parent=1 // loop_exit
      _
    %1779 = vsyncpa [#allocation3], 1
    %s1780 = scalar_lea.sflag [#allocation3], 1
    %1781 = vsyncpa %s1780, 1

</llo_original>
